<compile_context>
chip_gen: v5e
topology: v5e:2x2
jax: 0.10.0
libtpu: 0.0.40
codegen_flags: <defaults>
</compile_context>

<pallas_src>
import functools
import math

import jax
import jax.numpy as jnp
from jax.experimental import pallas as pl
from jax.experimental.pallas import tpu as pltpu


# ----------------------------- Pallas kernel ------------------------------ #
def _deconv_act_kernel(xm_ref, xh_ref, w_ref, b_ref, o_ref, *,
                       cout, kh, kw, toh, wp, wout, negative_slope):
    """One grid step = TOH output rows of one image.

    xm_ref: (1, Cin, TOH*Wp)    bf16  main rows, row-flattened with pitch Wp
    xh_ref: (1, 1, Cin, kh*Wp)  bf16  kh halo rows that follow the tile
    w_ref : (kh*kw, Cout, Cin)  bf16  flipped + spectrally-normalized taps (resident)
    b_ref : (Cout, 1)           f32   bias (resident)
    o_ref : (1, Cout, TOH*Wout)       lane-dense output block

    With rows flattened at pitch Wp, tap (ky, kx) of every output pixel of the tile is
    the single lane-slice xfull[:, ky*Wp+kx : ky*Wp+kx + TOH*Wp]; the kw-1 trailing
    garbage columns per row are discarded when storing.
    """
    l = toh * wp
    xfull = jnp.concatenate([xm_ref[0], xh_ref[0, 0]], axis=-1)     # (Cin, (TOH+kh)*Wp)

    # Bias folded into the accumulator init; K*K accumulating MXU dots (contraction=Cin).
    acc = jnp.broadcast_to(b_ref[...], (cout, l))                   # f32
    for ky in range(kh):
        for kx in range(kw):
            off = ky * wp + kx
            tap = xfull[:, off: off + l]                            # (Cin, TOH*Wp)
            acc = acc + jnp.dot(w_ref[ky * kw + kx], tap,
                                preferred_element_type=jnp.float32)

    y = jnp.maximum(acc, negative_slope * acc)                      # LeakyReLU (mul + max)

    # Repack pitch Wp -> Wout while storing (drops the kw-1 garbage columns per row).
    for r in range(toh):
        o_ref[0, :, r * wout:(r + 1) * wout] = (
            y[:, r * wp: r * wp + wout].astype(o_ref.dtype))


# ------------------------------- helpers ----------------------------------- #
def _lcm(a, b):
    return a * b // math.gcd(a, b)


def spectral_normalize(weight, u, eps=1e-12):
    """torch.nn.utils.spectral_norm forward (n_power_iterations=1).

    torch uses dim=1 for ConvTranspose2d: weight_mat = (Cout, Cin*kH*kW), u has length
    Cout.  Returns (normalized weight, updated u)."""
    cin, cout, kh, kw = weight.shape
    w_mat = jnp.transpose(weight, (1, 0, 2, 3)).reshape(cout, -1)   # (Cout, Cin*kH*kW)
    v = w_mat.T @ u
    v = v / (jnp.linalg.norm(v) + eps)
    u_new = w_mat @ v
    u_new = u_new / (jnp.linalg.norm(u_new) + eps)
    sigma = jnp.dot(u_new, w_mat @ v)
    return weight / sigma, u_new


def _zero_insert_and_pad(x, stride, kh, kw, padding, output_padding):
    """NCHW zero-insertion (stride) + padding so the transposed conv becomes a plain
    stride-1 correlation with the flipped kernel.  Negative pads (padding > k-1) crop."""
    n, c, h, w = x.shape
    hd, wd = (h - 1) * stride + 1, (w - 1) * stride + 1
    xd = jnp.zeros((n, c, hd, wd), x.dtype).at[:, :, ::stride, ::stride].set(x)
    ph = (kh - 1 - padding, kh - 1 - padding + output_padding)
    pw = (kw - 1 - padding, kw - 1 - padding + output_padding)
    xp = jnp.pad(xd, ((0, 0), (0, 0),
                      (max(ph[0], 0), max(ph[1], 0)),
                      (max(pw[0], 0), max(pw[1], 0))))
    hp, wp = xp.shape[2], xp.shape[3]
    return xp[:, :,
              max(-ph[0], 0): hp - max(-ph[1], 0),
              max(-pw[0], 0): wp - max(-pw[1], 0)]


def _vmem_capacity_bytes():
    try:
        return int(pltpu.get_tpu_info().vmem_capacity_bytes)
    except Exception:
        return 64 * 1024 * 1024   # assume the smallest part (v7x, 64 MiB); safe on v5e/v6e


def _tile_bytes(toh, *, cin, cout, kh, kw, wp, wout, out_itemsize):
    """Rough VMEM footprint of one grid step (double-buffered blocks + kernel temps)."""
    l = toh * wp
    b = 2 * cin * l * 2                          # x_main block (bf16, double-buffered)
    b += 2 * cin * kh * wp * 2                   # halo block
    b += 2 * cout * toh * wout * out_itemsize    # output block
    b += 2 * kh * kw * cout * cin * 2            # resident taps (counted x2, conservative)
    b += cin * (toh + kh) * wp * 2               # concatenated halo tile (value)
    b += 2 * cin * l * 2                         # tap-slice temporaries
    b += 2 * cout * l * 4                        # f32 accumulator + activated copy
    return b


def _choose_row_tile(hout, wout, wp, cin, cout, kh, kw, n, out_itemsize, vmem_budget):
    """Pick TOH = output rows per tile.

    Multi-tile blocks need lane-aligned last dims (TOH*Wp and TOH*Wout % 128 == 0), so
    TOH must be a multiple of `gran`; a single full-height tile (block == full array) has
    no alignment constraint.  Ragged last tiles are fine (Pallas masks the overhang), and
    when batch == 1 we prefer >= 2 tiles so both v7x TensorCores get work."""
    gran = _lcm(128 // math.gcd(wout, 128), 128 // math.gcd(wp, 128))
    cands = list(range(gran, hout + 1, gran))
    if n == 1:
        two_core = [c for c in cands if pl.cdiv(hout, c) >= 2]
        if two_core:
            cands = two_core

    def nbytes(c):
        return _tile_bytes(c, cin=cin, cout=cout, kh=kh, kw=kw, wp=wp,
                           wout=wout, out_itemsize=out_itemsize)

    fitting = [c for c in cands if nbytes(c) <= vmem_budget]
    if fitting:
        # Least ragged waste first, then the largest tile (fewer steps, bigger DMAs).
        return min(fitting, key=lambda c: (pl.cdiv(hout, c) * c - hout, -c))
    if cands:
        return cands[0]      # smallest aligned tile; may exceed the soft budget
    return hout              # small image: one full-height tile per image


# ------------------------------- wrapper ------------------------------------ #
def deconv_with_activation(x_nchw, weight, bias, u, *, stride, padding, output_padding,
                           negative_slope=0.2, compute_dtype=jnp.bfloat16,
                           out_dtype=jnp.float32):
    """Forward of DeConvWithActivation.

    x_nchw: (N, Cin, H, W) f32, weight: (Cin, Cout, kH, kW) (PyTorch ConvTranspose2d
    layout), bias: (Cout,), u: (Cout,) spectral-norm power-iteration vector.
    Returns (out NCHW in out_dtype, updated u)."""
    w_sn, u_new = spectral_normalize(weight, u)

    n, cin, h, w = x_nchw.shape
    cin_w, cout, kh, kw = weight.shape
    assert cin == cin_w

    # Zero-insert (stride) + pad so the transposed conv becomes a stride-1 correlation
    # with the flipped kernel.  Staged in bf16 so the kernel-side HBM read is half-width.
    # Under jit, the pad / slice / reshape staging below fuses into a single producer.
    # TODO(synk): polyphase (stride^2 sub-filter) decomposition would avoid reading the
    # inserted zeros from HBM entirely; left as a follow-up.
    x_pad = _zero_insert_and_pad(x_nchw.astype(compute_dtype), stride, kh, kw,
                                 padding, output_padding)
    hp, wp = x_pad.shape[2], x_pad.shape[3]
    hout, wout = hp - kh + 1, wp - kw + 1

    cap = _vmem_capacity_bytes()
    budget = max(min(int(0.75 * cap), cap - 16 * 1024 * 1024), 8 * 1024 * 1024)
    out_itemsize = jnp.dtype(out_dtype).itemsize
    toh = _choose_row_tile(hout, wout, wp, cin, cout, kh, kw, n, out_itemsize, budget)
    num_tiles = pl.cdiv(hout, toh)

    # Row-pad so every tile's main block and kh-row halo stay in bounds.
    rows_needed = num_tiles * toh + kh
    x_pad = jnp.pad(x_pad, ((0, 0), (0, 0), (0, rows_needed - hp), (0, 0)))

    # Main rows, row-flattened with pitch Wp: one contiguous lane-dense block per tile.
    x_main = x_pad[:, :, :num_tiles * toh, :].reshape(n, cin, num_tiles * toh * wp)
    # Per-tile halo: the kh rows following each tile (duplicated in HBM, ~kh/TOH extra).
    halo_idx = [(t + 1) * toh + r for t in range(num_tiles) for r in range(kh)]
    x_halo = x_pad[:, :, halo_idx, :].reshape(n, cin, num_tiles, kh * wp)
    x_halo = jnp.transpose(x_halo, (0, 2, 1, 3))                    # (N, T, Cin, kh*Wp)

    # Per-tap weights:
    #   out[co,oy,ox] = sum_{ci,ky,kx} x_pad[ci,oy+ky,ox+kx] * w_sn[ci,co,kh-1-ky,kw-1-kx]
    w_taps = jnp.transpose(w_sn[:, :, ::-1, ::-1], (2, 3, 1, 0))    # (kh, kw, Cout, Cin)
    w_taps = w_taps.reshape(kh * kw, cout, cin).astype(compute_dtype)
    b2 = bias.reshape(cout, 1).astype(jnp.float32)

    tile_b = _tile_bytes(toh, cin=cin, cout=cout, kh=kh, kw=kw, wp=wp, wout=wout,
                         out_itemsize=out_itemsize)
    # Never below the real double-buffered requirement; never above physical capacity.
    vmem_limit = int(min(max(tile_b + 2 * 1024 * 1024, 16 * 1024 * 1024), cap))

    kernel = functools.partial(_deconv_act_kernel, cout=cout, kh=kh, kw=kw, toh=toh,
                               wp=wp, wout=wout, negative_slope=negative_slope)
    grid = (n, num_tiles)

    out = pl.pallas_call(
        kernel,
        out_shape=jax.ShapeDtypeStruct((n, cout, hout * wout), out_dtype),
        grid_spec=pltpu.PrefetchScalarGridSpec(
            num_scalar_prefetch=0,
            grid=grid,
            in_specs=[
                # On v7x one could additionally try pipeline_mode=pl.Buffered(3) here.
                pl.BlockSpec((1, cin, toh * wp), lambda b, t: (b, 0, t)),
                pl.BlockSpec((1, 1, cin, kh * wp), lambda b, t: (b, t, 0, 0)),
                pl.BlockSpec((kh * kw, cout, cin), lambda b, t: (0, 0, 0)),
                pl.BlockSpec((cout, 1), lambda b, t: (0, 0)),
            ],
            out_specs=pl.BlockSpec((1, cout, toh * wout), lambda b, t: (b, 0, t)),
        ),
        compiler_params=pltpu.CompilerParams(
            dimension_semantics=("parallel", "parallel"),
            vmem_limit_bytes=vmem_limit,
        ),
    )(x_main, x_halo, w_taps, b2)

    # (N, Cout, HW) -> NCHW: metadata-only reshape, no trailing transpose.
    return out.reshape(n, cout, hout, wout), u_new


# ------------------------------ reference (check) -------------------------- #
def _reference(x_nchw, weight, bias, u, *, stride, padding, output_padding,
               negative_slope=0.2, compute_dtype=jnp.float32):
    w_sn, _ = spectral_normalize(weight, u)
    cin, cout, kh, kw = weight.shape
    w_oihw = jnp.transpose(w_sn, (1, 0, 2, 3))[:, :, ::-1, ::-1]
    y = jax.lax.conv_general_dilated(
        x_nchw.astype(compute_dtype), w_oihw.astype(compute_dtype),
        window_strides=(1, 1),
        padding=[(kh - 1 - padding, kh - 1 - padding + output_padding),
                 (kw - 1 - padding, kw - 1 - padding + output_padding)],
        lhs_dilation=(stride, stride),
        dimension_numbers=("NCHW", "OIHW", "NCHW"),
        preferred_element_type=jnp.float32)
    y = y + bias.reshape(1, cout, 1, 1).astype(jnp.float32)
    return jnp.where(y > 0, y, negative_slope * y)


# ----------------------------------- main ---------------------------------- #
if __name__ == "__main__":
    key = jax.random.PRNGKey(0)
    k_x, k_w, k_b, k_u = jax.random.split(key, 4)

    N, Cin, H, W = 2, 4, 16, 16
    Cout, K = 8, 3
    stride, padding, output_padding = 2, 1, 1   # upsampling deconv: 16x16 -> 32x32

    x = jax.random.normal(k_x, (N, Cin, H, W), dtype=jnp.float32)

    # kaiming_normal_ on ConvTranspose2d weight (Cin, Cout, kH, kW): fan_in = Cout*K*K
    fan_in = Cout * K * K
    weight = jax.random.normal(k_w, (Cin, Cout, K, K), dtype=jnp.float32) * jnp.sqrt(2.0 / fan_in)
    bound = 1.0 / jnp.sqrt(float(fan_in))
    bias = jax.random.uniform(k_b, (Cout,), jnp.float32, -bound, bound)
    # spectral_norm power-iteration vector: torch uses dim=1 for ConvTranspose2d -> (Cout,)
    u = jax.random.normal(k_u, (Cout,), dtype=jnp.float32)
    u = u / (jnp.linalg.norm(u) + 1e-12)

    fwd = jax.jit(functools.partial(deconv_with_activation, stride=stride,
                                    padding=padding, output_padding=output_padding))
    out, u_new = fwd(x, weight, bias, u)
    out = jax.block_until_ready(out)

    Hout = (H - 1) * stride - 2 * padding + (K - 1) + output_padding + 1
    Wout = (W - 1) * stride - 2 * padding + (K - 1) + output_padding + 1
    assert out.shape == (N, Cout, Hout, Wout)

    # Tight check vs an XLA reference that uses the same bf16 MXU operands (f32 accum).
    ref_bf16 = _reference(x, weight, bias, u, stride=stride, padding=padding,
                          output_padding=output_padding, compute_dtype=jnp.bfloat16)
    assert jnp.allclose(out, ref_bf16, rtol=1e-3, atol=1e-3), "mismatch vs bf16 XLA reference"

    # Looser check vs the full-f32 module semantics (covers the bf16 operand cast).
    ref_f32 = _reference(x, weight, bias, u, stride=stride, padding=padding,
                         output_padding=output_padding, compute_dtype=jnp.float32)
    assert jnp.allclose(out, ref_f32, rtol=5e-2, atol=5e-2), "mismatch vs f32 XLA reference"

    print("KERNEL_OK")
</pallas_src>

<mosaic_0001>
module attributes {stable_mosaic.version = 11 : i64} {
  func.func @_deconv_act_kernel(%arg0: i32, %arg1: i32, %arg2: memref<1x4x1088xbf16, #tpu.memory_space<vmem>>, %arg3: memref<1x1x4x102xbf16, #tpu.memory_space<vmem>>, %arg4: memref<9x8x4xbf16, #tpu.memory_space<vmem>>, %arg5: memref<8x1xf32, #tpu.memory_space<vmem>>, %arg6: memref<1x8x1024xf32, #tpu.memory_space<vmem>>) attributes {dimension_semantics = [#tpu.dimension_semantics<parallel>, #tpu.dimension_semantics<parallel>], iteration_bounds = array<i64: 2, 1>, scalar_prefetch = 0 : i64, scratch_operands = 0 : i64, tpu.core_type = #tpu.core_type<tc>, window_params = [{transform_indices = @transform_0, window_bounds = array<i64: 1, 4, 1088>}, {transform_indices = @transform_1, window_bounds = array<i64: 1, 1, 4, 102>}, {pipeline_mode = #tpu.pipeline_mode<synchronous>, transform_indices = @transform_2, window_bounds = array<i64: 9, 8, 4>}, {pipeline_mode = #tpu.pipeline_mode<synchronous>, transform_indices = @transform_3, window_bounds = array<i64: 8, 1>}, {transform_indices = @transform_4, window_bounds = array<i64: 1, 8, 1024>}]} {
    %c0 = arith.constant 0 : index
    %c0_0 = arith.constant 0 : index
    %c0_1 = arith.constant 0 : index
    %0 = vector.load %arg2[%c0, %c0_0, %c0_1] : memref<1x4x1088xbf16, #tpu.memory_space<vmem>>, vector<1x4x1088xbf16>
    %1 = vector.shape_cast %0 : vector<1x4x1088xbf16> to vector<4x1088xbf16>
    %c0_2 = arith.constant 0 : index
    %c0_3 = arith.constant 0 : index
    %c0_4 = arith.constant 0 : index
    %c0_5 = arith.constant 0 : index
    %2 = vector.load %arg3[%c0_2, %c0_3, %c0_4, %c0_5] : memref<1x1x4x102xbf16, #tpu.memory_space<vmem>>, vector<1x1x4x102xbf16>
    %3 = vector.shape_cast %2 : vector<1x1x4x102xbf16> to vector<4x102xbf16>
    %4 = tpu.concatenate %1, %3 in 1 : vector<4x1088xbf16>, vector<4x102xbf16> -> vector<4x1190xbf16>
    %c0_6 = arith.constant 0 : index
    %c0_7 = arith.constant 0 : index
    %5 = vector.load %arg5[%c0_6, %c0_7] : memref<8x1xf32, #tpu.memory_space<vmem>>, vector<8x1xf32>
    %6 = vector.shape_cast %5 : vector<8x1xf32> to vector<8x1xf32>
    %7 = vector.broadcast %6 : vector<8x1xf32> to vector<8x1088xf32>
    %8 = vector.extract_strided_slice %4 {offsets = [0, 0], sizes = [4, 1088], strides = [1, 1]} : vector<4x1190xbf16> to vector<4x1088xbf16>
    %c0_8 = arith.constant 0 : index
    %c0_9 = arith.constant 0 : index
    %c0_10 = arith.constant 0 : index
    %9 = vector.load %arg4[%c0_8, %c0_9, %c0_10] : memref<9x8x4xbf16, #tpu.memory_space<vmem>>, vector<1x8x4xbf16>
    %10 = vector.shape_cast %9 : vector<1x8x4xbf16> to vector<8x4xbf16>
    %cst = arith.constant dense<0.000000e+00> : vector<8x1088xf32>
    %11 = tpu.matmul %10, %8, %cst {dimension_numbers = #tpu.dot_dimension_numbers<[1], [0], [0], [1], [0, 0, 1, 1], [], []>} : vector<8x4xbf16>, vector<4x1088xbf16>, vector<8x1088xf32> -> vector<8x1088xf32>
    %12 = arith.addf %7, %11 : vector<8x1088xf32>
    %13 = vector.extract_strided_slice %4 {offsets = [0, 1], sizes = [4, 1088], strides = [1, 1]} : vector<4x1190xbf16> to vector<4x1088xbf16>
    %c1 = arith.constant 1 : index
    %c0_11 = arith.constant 0 : index
    %c0_12 = arith.constant 0 : index
    %14 = vector.load %arg4[%c1, %c0_11, %c0_12] : memref<9x8x4xbf16, #tpu.memory_space<vmem>>, vector<1x8x4xbf16>
    %15 = vector.shape_cast %14 : vector<1x8x4xbf16> to vector<8x4xbf16>
    %cst_13 = arith.constant dense<0.000000e+00> : vector<8x1088xf32>
    %16 = tpu.matmul %15, %13, %cst_13 {dimension_numbers = #tpu.dot_dimension_numbers<[1], [0], [0], [1], [0, 0, 1, 1], [], []>} : vector<8x4xbf16>, vector<4x1088xbf16>, vector<8x1088xf32> -> vector<8x1088xf32>
    %17 = arith.addf %12, %16 : vector<8x1088xf32>
    %18 = vector.extract_strided_slice %4 {offsets = [0, 2], sizes = [4, 1088], strides = [1, 1]} : vector<4x1190xbf16> to vector<4x1088xbf16>
    %c2 = arith.constant 2 : index
    %c0_14 = arith.constant 0 : index
    %c0_15 = arith.constant 0 : index
    %19 = vector.load %arg4[%c2, %c0_14, %c0_15] : memref<9x8x4xbf16, #tpu.memory_space<vmem>>, vector<1x8x4xbf16>
    %20 = vector.shape_cast %19 : vector<1x8x4xbf16> to vector<8x4xbf16>
    %cst_16 = arith.constant dense<0.000000e+00> : vector<8x1088xf32>
    %21 = tpu.matmul %20, %18, %cst_16 {dimension_numbers = #tpu.dot_dimension_numbers<[1], [0], [0], [1], [0, 0, 1, 1], [], []>} : vector<8x4xbf16>, vector<4x1088xbf16>, vector<8x1088xf32> -> vector<8x1088xf32>
    %22 = arith.addf %17, %21 : vector<8x1088xf32>
    %23 = vector.extract_strided_slice %4 {offsets = [0, 34], sizes = [4, 1088], strides = [1, 1]} : vector<4x1190xbf16> to vector<4x1088xbf16>
    %c3 = arith.constant 3 : index
    %c0_17 = arith.constant 0 : index
    %c0_18 = arith.constant 0 : index
    %24 = vector.load %arg4[%c3, %c0_17, %c0_18] : memref<9x8x4xbf16, #tpu.memory_space<vmem>>, vector<1x8x4xbf16>
    %25 = vector.shape_cast %24 : vector<1x8x4xbf16> to vector<8x4xbf16>
    %cst_19 = arith.constant dense<0.000000e+00> : vector<8x1088xf32>
    %26 = tpu.matmul %25, %23, %cst_19 {dimension_numbers = #tpu.dot_dimension_numbers<[1], [0], [0], [1], [0, 0, 1, 1], [], []>} : vector<8x4xbf16>, vector<4x1088xbf16>, vector<8x1088xf32> -> vector<8x1088xf32>
    %27 = arith.addf %22, %26 : vector<8x1088xf32>
    %28 = vector.extract_strided_slice %4 {offsets = [0, 35], sizes = [4, 1088], strides = [1, 1]} : vector<4x1190xbf16> to vector<4x1088xbf16>
    %c4 = arith.constant 4 : index
    %c0_20 = arith.constant 0 : index
    %c0_21 = arith.constant 0 : index
    %29 = vector.load %arg4[%c4, %c0_20, %c0_21] : memref<9x8x4xbf16, #tpu.memory_space<vmem>>, vector<1x8x4xbf16>
    %30 = vector.shape_cast %29 : vector<1x8x4xbf16> to vector<8x4xbf16>
    %cst_22 = arith.constant dense<0.000000e+00> : vector<8x1088xf32>
    %31 = tpu.matmul %30, %28, %cst_22 {dimension_numbers = #tpu.dot_dimension_numbers<[1], [0], [0], [1], [0, 0, 1, 1], [], []>} : vector<8x4xbf16>, vector<4x1088xbf16>, vector<8x1088xf32> -> vector<8x1088xf32>
    %32 = arith.addf %27, %31 : vector<8x1088xf32>
    %33 = vector.extract_strided_slice %4 {offsets = [0, 36], sizes = [4, 1088], strides = [1, 1]} : vector<4x1190xbf16> to vector<4x1088xbf16>
    %c5 = arith.constant 5 : index
    %c0_23 = arith.constant 0 : index
    %c0_24 = arith.constant 0 : index
    %34 = vector.load %arg4[%c5, %c0_23, %c0_24] : memref<9x8x4xbf16, #tpu.memory_space<vmem>>, vector<1x8x4xbf16>
    %35 = vector.shape_cast %34 : vector<1x8x4xbf16> to vector<8x4xbf16>
    %cst_25 = arith.constant dense<0.000000e+00> : vector<8x1088xf32>
    %36 = tpu.matmul %35, %33, %cst_25 {dimension_numbers = #tpu.dot_dimension_numbers<[1], [0], [0], [1], [0, 0, 1, 1], [], []>} : vector<8x4xbf16>, vector<4x1088xbf16>, vector<8x1088xf32> -> vector<8x1088xf32>
    %37 = arith.addf %32, %36 : vector<8x1088xf32>
    %38 = vector.extract_strided_slice %4 {offsets = [0, 68], sizes = [4, 1088], strides = [1, 1]} : vector<4x1190xbf16> to vector<4x1088xbf16>
    %c6 = arith.constant 6 : index
    %c0_26 = arith.constant 0 : index
    %c0_27 = arith.constant 0 : index
    %39 = vector.load %arg4[%c6, %c0_26, %c0_27] : memref<9x8x4xbf16, #tpu.memory_space<vmem>>, vector<1x8x4xbf16>
    %40 = vector.shape_cast %39 : vector<1x8x4xbf16> to vector<8x4xbf16>
    %cst_28 = arith.constant dense<0.000000e+00> : vector<8x1088xf32>
    %41 = tpu.matmul %40, %38, %cst_28 {dimension_numbers = #tpu.dot_dimension_numbers<[1], [0], [0], [1], [0, 0, 1, 1], [], []>} : vector<8x4xbf16>, vector<4x1088xbf16>, vector<8x1088xf32> -> vector<8x1088xf32>
    %42 = arith.addf %37, %41 : vector<8x1088xf32>
    %43 = vector.extract_strided_slice %4 {offsets = [0, 69], sizes = [4, 1088], strides = [1, 1]} : vector<4x1190xbf16> to vector<4x1088xbf16>
    %c7 = arith.constant 7 : index
    %c0_29 = arith.constant 0 : index
    %c0_30 = arith.constant 0 : index
    %44 = vector.load %arg4[%c7, %c0_29, %c0_30] : memref<9x8x4xbf16, #tpu.memory_space<vmem>>, vector<1x8x4xbf16>
    %45 = vector.shape_cast %44 : vector<1x8x4xbf16> to vector<8x4xbf16>
    %cst_31 = arith.constant dense<0.000000e+00> : vector<8x1088xf32>
    %46 = tpu.matmul %45, %43, %cst_31 {dimension_numbers = #tpu.dot_dimension_numbers<[1], [0], [0], [1], [0, 0, 1, 1], [], []>} : vector<8x4xbf16>, vector<4x1088xbf16>, vector<8x1088xf32> -> vector<8x1088xf32>
    %47 = arith.addf %42, %46 : vector<8x1088xf32>
    %48 = vector.extract_strided_slice %4 {offsets = [0, 70], sizes = [4, 1088], strides = [1, 1]} : vector<4x1190xbf16> to vector<4x1088xbf16>
    %c8 = arith.constant 8 : index
    %c0_32 = arith.constant 0 : index
    %c0_33 = arith.constant 0 : index
    %49 = vector.load %arg4[%c8, %c0_32, %c0_33] : memref<9x8x4xbf16, #tpu.memory_space<vmem>>, vector<1x8x4xbf16>
    %50 = vector.shape_cast %49 : vector<1x8x4xbf16> to vector<8x4xbf16>
    %cst_34 = arith.constant dense<0.000000e+00> : vector<8x1088xf32>
    %51 = tpu.matmul %50, %48, %cst_34 {dimension_numbers = #tpu.dot_dimension_numbers<[1], [0], [0], [1], [0, 0, 1, 1], [], []>} : vector<8x4xbf16>, vector<4x1088xbf16>, vector<8x1088xf32> -> vector<8x1088xf32>
    %52 = arith.addf %47, %51 : vector<8x1088xf32>
    %cst_35 = arith.constant 2.000000e-01 : f32
    %53 = vector.broadcast %cst_35 : f32 to vector<8x1088xf32>
    %54 = arith.mulf %53, %52 : vector<8x1088xf32>
    %55 = arith.maximumf %52, %54 : vector<8x1088xf32>
    %56 = vector.extract_strided_slice %55 {offsets = [0, 0], sizes = [8, 32], strides = [1, 1]} : vector<8x1088xf32> to vector<8x32xf32>
    %c0_36 = arith.constant 0 : index
    %c0_37 = arith.constant 0 : index
    %c0_38 = arith.constant 0 : index
    %57 = vector.load %arg6[%c0_36, %c0_37, %c0_38] : memref<1x8x1024xf32, #tpu.memory_space<vmem>>, vector<1x8x32xf32>
    %58 = vector.shape_cast %57 : vector<1x8x32xf32> to vector<8x32xf32>
    %59 = vector.shape_cast %56 : vector<8x32xf32> to vector<1x8x32xf32>
    tpu.vector_store %arg6[%c0_36, %c0_37, %c0_38], %59 {strides = array<i32>} : memref<1x8x1024xf32, #tpu.memory_space<vmem>>, vector<1x8x32xf32>,
    %60 = vector.extract_strided_slice %55 {offsets = [0, 34], sizes = [8, 32], strides = [1, 1]} : vector<8x1088xf32> to vector<8x32xf32>
    %c0_39 = arith.constant 0 : index
    %c0_40 = arith.constant 0 : index
    %c32 = arith.constant 32 : index
    %61 = vector.load %arg6[%c0_39, %c0_40, %c32] : memref<1x8x1024xf32, #tpu.memory_space<vmem>>, vector<1x8x32xf32>
    %62 = vector.shape_cast %61 : vector<1x8x32xf32> to vector<8x32xf32>
    %63 = vector.shape_cast %60 : vector<8x32xf32> to vector<1x8x32xf32>
    tpu.vector_store %arg6[%c0_39, %c0_40, %c32], %63 {strides = array<i32>} : memref<1x8x1024xf32, #tpu.memory_space<vmem>>, vector<1x8x32xf32>,
    %64 = vector.extract_strided_slice %55 {offsets = [0, 68], sizes = [8, 32], strides = [1, 1]} : vector<8x1088xf32> to vector<8x32xf32>
    %c0_41 = arith.constant 0 : index
    %c0_42 = arith.constant 0 : index
    %c64 = arith.constant 64 : index
    %65 = vector.load %arg6[%c0_41, %c0_42, %c64] : memref<1x8x1024xf32, #tpu.memory_space<vmem>>, vector<1x8x32xf32>
    %66 = vector.shape_cast %65 : vector<1x8x32xf32> to vector<8x32xf32>
    %67 = vector.shape_cast %64 : vector<8x32xf32> to vector<1x8x32xf32>
    tpu.vector_store %arg6[%c0_41, %c0_42, %c64], %67 {strides = array<i32>} : memref<1x8x1024xf32, #tpu.memory_space<vmem>>, vector<1x8x32xf32>,
    %68 = vector.extract_strided_slice %55 {offsets = [0, 102], sizes = [8, 32], strides = [1, 1]} : vector<8x1088xf32> to vector<8x32xf32>
    %c0_43 = arith.constant 0 : index
    %c0_44 = arith.constant 0 : index
    %c96 = arith.constant 96 : index
    %69 = vector.load %arg6[%c0_43, %c0_44, %c96] : memref<1x8x1024xf32, #tpu.memory_space<vmem>>, vector<1x8x32xf32>
    %70 = vector.shape_cast %69 : vector<1x8x32xf32> to vector<8x32xf32>
    %71 = vector.shape_cast %68 : vector<8x32xf32> to vector<1x8x32xf32>
    tpu.vector_store %arg6[%c0_43, %c0_44, %c96], %71 {strides = array<i32>} : memref<1x8x1024xf32, #tpu.memory_space<vmem>>, vector<1x8x32xf32>,
    %72 = vector.extract_strided_slice %55 {offsets = [0, 136], sizes = [8, 32], strides = [1, 1]} : vector<8x1088xf32> to vector<8x32xf32>
    %c0_45 = arith.constant 0 : index
    %c0_46 = arith.constant 0 : index
    %c128 = arith.constant 128 : index
    %73 = vector.load %arg6[%c0_45, %c0_46, %c128] : memref<1x8x1024xf32, #tpu.memory_space<vmem>>, vector<1x8x32xf32>
    %74 = vector.shape_cast %73 : vector<1x8x32xf32> to vector<8x32xf32>
    %75 = vector.shape_cast %72 : vector<8x32xf32> to vector<1x8x32xf32>
    tpu.vector_store %arg6[%c0_45, %c0_46, %c128], %75 {strides = array<i32>} : memref<1x8x1024xf32, #tpu.memory_space<vmem>>, vector<1x8x32xf32>,
    %76 = vector.extract_strided_slice %55 {offsets = [0, 170], sizes = [8, 32], strides = [1, 1]} : vector<8x1088xf32> to vector<8x32xf32>
    %c0_47 = arith.constant 0 : index
    %c0_48 = arith.constant 0 : index
    %c160 = arith.constant 160 : index
    %77 = vector.load %arg6[%c0_47, %c0_48, %c160] : memref<1x8x1024xf32, #tpu.memory_space<vmem>>, vector<1x8x32xf32>
    %78 = vector.shape_cast %77 : vector<1x8x32xf32> to vector<8x32xf32>
    %79 = vector.shape_cast %76 : vector<8x32xf32> to vector<1x8x32xf32>
    tpu.vector_store %arg6[%c0_47, %c0_48, %c160], %79 {strides = array<i32>} : memref<1x8x1024xf32, #tpu.memory_space<vmem>>, vector<1x8x32xf32>,
    %80 = vector.extract_strided_slice %55 {offsets = [0, 204], sizes = [8, 32], strides = [1, 1]} : vector<8x1088xf32> to vector<8x32xf32>
    %c0_49 = arith.constant 0 : index
    %c0_50 = arith.constant 0 : index
    %c192 = arith.constant 192 : index
    %81 = vector.load %arg6[%c0_49, %c0_50, %c192] : memref<1x8x1024xf32, #tpu.memory_space<vmem>>, vector<1x8x32xf32>
    %82 = vector.shape_cast %81 : vector<1x8x32xf32> to vector<8x32xf32>
    %83 = vector.shape_cast %80 : vector<8x32xf32> to vector<1x8x32xf32>
    tpu.vector_store %arg6[%c0_49, %c0_50, %c192], %83 {strides = array<i32>} : memref<1x8x1024xf32, #tpu.memory_space<vmem>>, vector<1x8x32xf32>,
    %84 = vector.extract_strided_slice %55 {offsets = [0, 238], sizes = [8, 32], strides = [1, 1]} : vector<8x1088xf32> to vector<8x32xf32>
    %c0_51 = arith.constant 0 : index
    %c0_52 = arith.constant 0 : index
    %c224 = arith.constant 224 : index
    %85 = vector.load %arg6[%c0_51, %c0_52, %c224] : memref<1x8x1024xf32, #tpu.memory_space<vmem>>, vector<1x8x32xf32>
    %86 = vector.shape_cast %85 : vector<1x8x32xf32> to vector<8x32xf32>
    %87 = vector.shape_cast %84 : vector<8x32xf32> to vector<1x8x32xf32>
    tpu.vector_store %arg6[%c0_51, %c0_52, %c224], %87 {strides = array<i32>} : memref<1x8x1024xf32, #tpu.memory_space<vmem>>, vector<1x8x32xf32>,
    %88 = vector.extract_strided_slice %55 {offsets = [0, 272], sizes = [8, 32], strides = [1, 1]} : vector<8x1088xf32> to vector<8x32xf32>
    %c0_53 = arith.constant 0 : index
    %c0_54 = arith.constant 0 : index
    %c256 = arith.constant 256 : index
    %89 = vector.load %arg6[%c0_53, %c0_54, %c256] : memref<1x8x1024xf32, #tpu.memory_space<vmem>>, vector<1x8x32xf32>
    %90 = vector.shape_cast %89 : vector<1x8x32xf32> to vector<8x32xf32>
    %91 = vector.shape_cast %88 : vector<8x32xf32> to vector<1x8x32xf32>
    tpu.vector_store %arg6[%c0_53, %c0_54, %c256], %91 {strides = array<i32>} : memref<1x8x1024xf32, #tpu.memory_space<vmem>>, vector<1x8x32xf32>,
    %92 = vector.extract_strided_slice %55 {offsets = [0, 306], sizes = [8, 32], strides = [1, 1]} : vector<8x1088xf32> to vector<8x32xf32>
    %c0_55 = arith.constant 0 : index
    %c0_56 = arith.constant 0 : index
    %c288 = arith.constant 288 : index
    %93 = vector.load %arg6[%c0_55, %c0_56, %c288] : memref<1x8x1024xf32, #tpu.memory_space<vmem>>, vector<1x8x32xf32>
    %94 = vector.shape_cast %93 : vector<1x8x32xf32> to vector<8x32xf32>
    %95 = vector.shape_cast %92 : vector<8x32xf32> to vector<1x8x32xf32>
    tpu.vector_store %arg6[%c0_55, %c0_56, %c288], %95 {strides = array<i32>} : memref<1x8x1024xf32, #tpu.memory_space<vmem>>, vector<1x8x32xf32>,
    %96 = vector.extract_strided_slice %55 {offsets = [0, 340], sizes = [8, 32], strides = [1, 1]} : vector<8x1088xf32> to vector<8x32xf32>
    %c0_57 = arith.constant 0 : index
    %c0_58 = arith.constant 0 : index
    %c320 = arith.constant 320 : index
    %97 = vector.load %arg6[%c0_57, %c0_58, %c320] : memref<1x8x1024xf32, #tpu.memory_space<vmem>>, vector<1x8x32xf32>
    %98 = vector.shape_cast %97 : vector<1x8x32xf32> to vector<8x32xf32>
    %99 = vector.shape_cast %96 : vector<8x32xf32> to vector<1x8x32xf32>
    tpu.vector_store %arg6[%c0_57, %c0_58, %c320], %99 {strides = array<i32>} : memref<1x8x1024xf32, #tpu.memory_space<vmem>>, vector<1x8x32xf32>,
    %100 = vector.extract_strided_slice %55 {offsets = [0, 374], sizes = [8, 32], strides = [1, 1]} : vector<8x1088xf32> to vector<8x32xf32>
    %c0_59 = arith.constant 0 : index
    %c0_60 = arith.constant 0 : index
    %c352 = arith.constant 352 : index
    %101 = vector.load %arg6[%c0_59, %c0_60, %c352] : memref<1x8x1024xf32, #tpu.memory_space<vmem>>, vector<1x8x32xf32>
    %102 = vector.shape_cast %101 : vector<1x8x32xf32> to vector<8x32xf32>
    %103 = vector.shape_cast %100 : vector<8x32xf32> to vector<1x8x32xf32>
    tpu.vector_store %arg6[%c0_59, %c0_60, %c352], %103 {strides = array<i32>} : memref<1x8x1024xf32, #tpu.memory_space<vmem>>, vector<1x8x32xf32>,
    %104 = vector.extract_strided_slice %55 {offsets = [0, 408], sizes = [8, 32], strides = [1, 1]} : vector<8x1088xf32> to vector<8x32xf32>
    %c0_61 = arith.constant 0 : index
    %c0_62 = arith.constant 0 : index
    %c384 = arith.constant 384 : index
    %105 = vector.load %arg6[%c0_61, %c0_62, %c384] : memref<1x8x1024xf32, #tpu.memory_space<vmem>>, vector<1x8x32xf32>
    %106 = vector.shape_cast %105 : vector<1x8x32xf32> to vector<8x32xf32>
    %107 = vector.shape_cast %104 : vector<8x32xf32> to vector<1x8x32xf32>
    tpu.vector_store %arg6[%c0_61, %c0_62, %c384], %107 {strides = array<i32>} : memref<1x8x1024xf32, #tpu.memory_space<vmem>>, vector<1x8x32xf32>,
    %108 = vector.extract_strided_slice %55 {offsets = [0, 442], sizes = [8, 32], strides = [1, 1]} : vector<8x1088xf32> to vector<8x32xf32>
    %c0_63 = arith.constant 0 : index
    %c0_64 = arith.constant 0 : index
    %c416 = arith.constant 416 : index
    %109 = vector.load %arg6[%c0_63, %c0_64, %c416] : memref<1x8x1024xf32, #tpu.memory_space<vmem>>, vector<1x8x32xf32>
    %110 = vector.shape_cast %109 : vector<1x8x32xf32> to vector<8x32xf32>
    %111 = vector.shape_cast %108 : vector<8x32xf32> to vector<1x8x32xf32>
    tpu.vector_store %arg6[%c0_63, %c0_64, %c416], %111 {strides = array<i32>} : memref<1x8x1024xf32, #tpu.memory_space<vmem>>, vector<1x8x32xf32>,
    %112 = vector.extract_strided_slice %55 {offsets = [0, 476], sizes = [8, 32], strides = [1, 1]} : vector<8x1088xf32> to vector<8x32xf32>
    %c0_65 = arith.constant 0 : index
    %c0_66 = arith.constant 0 : index
    %c448 = arith.constant 448 : index
    %113 = vector.load %arg6[%c0_65, %c0_66, %c448] : memref<1x8x1024xf32, #tpu.memory_space<vmem>>, vector<1x8x32xf32>
    %114 = vector.shape_cast %113 : vector<1x8x32xf32> to vector<8x32xf32>
    %115 = vector.shape_cast %112 : vector<8x32xf32> to vector<1x8x32xf32>
    tpu.vector_store %arg6[%c0_65, %c0_66, %c448], %115 {strides = array<i32>} : memref<1x8x1024xf32, #tpu.memory_space<vmem>>, vector<1x8x32xf32>,
    %116 = vector.extract_strided_slice %55 {offsets = [0, 510], sizes = [8, 32], strides = [1, 1]} : vector<8x1088xf32> to vector<8x32xf32>
    %c0_67 = arith.constant 0 : index
    %c0_68 = arith.constant 0 : index
    %c480 = arith.constant 480 : index
    %117 = vector.load %arg6[%c0_67, %c0_68, %c480] : memref<1x8x1024xf32, #tpu.memory_space<vmem>>, vector<1x8x32xf32>
    %118 = vector.shape_cast %117 : vector<1x8x32xf32> to vector<8x32xf32>
    %119 = vector.shape_cast %116 : vector<8x32xf32> to vector<1x8x32xf32>
    tpu.vector_store %arg6[%c0_67, %c0_68, %c480], %119 {strides = array<i32>} : memref<1x8x1024xf32, #tpu.memory_space<vmem>>, vector<1x8x32xf32>,
    %120 = vector.extract_strided_slice %55 {offsets = [0, 544], sizes = [8, 32], strides = [1, 1]} : vector<8x1088xf32> to vector<8x32xf32>
    %c0_69 = arith.constant 0 : index
    %c0_70 = arith.constant 0 : index
    %c512 = arith.constant 512 : index
    %121 = vector.load %arg6[%c0_69, %c0_70, %c512] : memref<1x8x1024xf32, #tpu.memory_space<vmem>>, vector<1x8x32xf32>
    %122 = vector.shape_cast %121 : vector<1x8x32xf32> to vector<8x32xf32>
    %123 = vector.shape_cast %120 : vector<8x32xf32> to vector<1x8x32xf32>
    tpu.vector_store %arg6[%c0_69, %c0_70, %c512], %123 {strides = array<i32>} : memref<1x8x1024xf32, #tpu.memory_space<vmem>>, vector<1x8x32xf32>,
    %124 = vector.extract_strided_slice %55 {offsets = [0, 578], sizes = [8, 32], strides = [1, 1]} : vector<8x1088xf32> to vector<8x32xf32>
    %c0_71 = arith.constant 0 : index
    %c0_72 = arith.constant 0 : index
    %c544 = arith.constant 544 : index
    %125 = vector.load %arg6[%c0_71, %c0_72, %c544] : memref<1x8x1024xf32, #tpu.memory_space<vmem>>, vector<1x8x32xf32>
    %126 = vector.shape_cast %125 : vector<1x8x32xf32> to vector<8x32xf32>
    %127 = vector.shape_cast %124 : vector<8x32xf32> to vector<1x8x32xf32>
    tpu.vector_store %arg6[%c0_71, %c0_72, %c544], %127 {strides = array<i32>} : memref<1x8x1024xf32, #tpu.memory_space<vmem>>, vector<1x8x32xf32>,
    %128 = vector.extract_strided_slice %55 {offsets = [0, 612], sizes = [8, 32], strides = [1, 1]} : vector<8x1088xf32> to vector<8x32xf32>
    %c0_73 = arith.constant 0 : index
    %c0_74 = arith.constant 0 : index
    %c576 = arith.constant 576 : index
    %129 = vector.load %arg6[%c0_73, %c0_74, %c576] : memref<1x8x1024xf32, #tpu.memory_space<vmem>>, vector<1x8x32xf32>
    %130 = vector.shape_cast %129 : vector<1x8x32xf32> to vector<8x32xf32>
    %131 = vector.shape_cast %128 : vector<8x32xf32> to vector<1x8x32xf32>
    tpu.vector_store %arg6[%c0_73, %c0_74, %c576], %131 {strides = array<i32>} : memref<1x8x1024xf32, #tpu.memory_space<vmem>>, vector<1x8x32xf32>,
    %132 = vector.extract_strided_slice %55 {offsets = [0, 646], sizes = [8, 32], strides = [1, 1]} : vector<8x1088xf32> to vector<8x32xf32>
    %c0_75 = arith.constant 0 : index
    %c0_76 = arith.constant 0 : index
    %c608 = arith.constant 608 : index
    %133 = vector.load %arg6[%c0_75, %c0_76, %c608] : memref<1x8x1024xf32, #tpu.memory_space<vmem>>, vector<1x8x32xf32>
    %134 = vector.shape_cast %133 : vector<1x8x32xf32> to vector<8x32xf32>
    %135 = vector.shape_cast %132 : vector<8x32xf32> to vector<1x8x32xf32>
    tpu.vector_store %arg6[%c0_75, %c0_76, %c608], %135 {strides = array<i32>} : memref<1x8x1024xf32, #tpu.memory_space<vmem>>, vector<1x8x32xf32>,
    %136 = vector.extract_strided_slice %55 {offsets = [0, 680], sizes = [8, 32], strides = [1, 1]} : vector<8x1088xf32> to vector<8x32xf32>
    %c0_77 = arith.constant 0 : index
    %c0_78 = arith.constant 0 : index
    %c640 = arith.constant 640 : index
    %137 = vector.load %arg6[%c0_77, %c0_78, %c640] : memref<1x8x1024xf32, #tpu.memory_space<vmem>>, vector<1x8x32xf32>
    %138 = vector.shape_cast %137 : vector<1x8x32xf32> to vector<8x32xf32>
    %139 = vector.shape_cast %136 : vector<8x32xf32> to vector<1x8x32xf32>
    tpu.vector_store %arg6[%c0_77, %c0_78, %c640], %139 {strides = array<i32>} : memref<1x8x1024xf32, #tpu.memory_space<vmem>>, vector<1x8x32xf32>,
    %140 = vector.extract_strided_slice %55 {offsets = [0, 714], sizes = [8, 32], strides = [1, 1]} : vector<8x1088xf32> to vector<8x32xf32>
    %c0_79 = arith.constant 0 : index
    %c0_80 = arith.constant 0 : index
    %c672 = arith.constant 672 : index
    %141 = vector.load %arg6[%c0_79, %c0_80, %c672] : memref<1x8x1024xf32, #tpu.memory_space<vmem>>, vector<1x8x32xf32>
    %142 = vector.shape_cast %141 : vector<1x8x32xf32> to vector<8x32xf32>
    %143 = vector.shape_cast %140 : vector<8x32xf32> to vector<1x8x32xf32>
    tpu.vector_store %arg6[%c0_79, %c0_80, %c672], %143 {strides = array<i32>} : memref<1x8x1024xf32, #tpu.memory_space<vmem>>, vector<1x8x32xf32>,
    %144 = vector.extract_strided_slice %55 {offsets = [0, 748], sizes = [8, 32], strides = [1, 1]} : vector<8x1088xf32> to vector<8x32xf32>
    %c0_81 = arith.constant 0 : index
    %c0_82 = arith.constant 0 : index
    %c704 = arith.constant 704 : index
    %145 = vector.load %arg6[%c0_81, %c0_82, %c704] : memref<1x8x1024xf32, #tpu.memory_space<vmem>>, vector<1x8x32xf32>
    %146 = vector.shape_cast %145 : vector<1x8x32xf32> to vector<8x32xf32>
    %147 = vector.shape_cast %144 : vector<8x32xf32> to vector<1x8x32xf32>
    tpu.vector_store %arg6[%c0_81, %c0_82, %c704], %147 {strides = array<i32>} : memref<1x8x1024xf32, #tpu.memory_space<vmem>>, vector<1x8x32xf32>,
    %148 = vector.extract_strided_slice %55 {offsets = [0, 782], sizes = [8, 32], strides = [1, 1]} : vector<8x1088xf32> to vector<8x32xf32>
    %c0_83 = arith.constant 0 : index
    %c0_84 = arith.constant 0 : index
    %c736 = arith.constant 736 : index
    %149 = vector.load %arg6[%c0_83, %c0_84, %c736] : memref<1x8x1024xf32, #tpu.memory_space<vmem>>, vector<1x8x32xf32>
    %150 = vector.shape_cast %149 : vector<1x8x32xf32> to vector<8x32xf32>
    %151 = vector.shape_cast %148 : vector<8x32xf32> to vector<1x8x32xf32>
    tpu.vector_store %arg6[%c0_83, %c0_84, %c736], %151 {strides = array<i32>} : memref<1x8x1024xf32, #tpu.memory_space<vmem>>, vector<1x8x32xf32>,
    %152 = vector.extract_strided_slice %55 {offsets = [0, 816], sizes = [8, 32], strides = [1, 1]} : vector<8x1088xf32> to vector<8x32xf32>
    %c0_85 = arith.constant 0 : index
    %c0_86 = arith.constant 0 : index
    %c768 = arith.constant 768 : index
    %153 = vector.load %arg6[%c0_85, %c0_86, %c768] : memref<1x8x1024xf32, #tpu.memory_space<vmem>>, vector<1x8x32xf32>
    %154 = vector.shape_cast %153 : vector<1x8x32xf32> to vector<8x32xf32>
    %155 = vector.shape_cast %152 : vector<8x32xf32> to vector<1x8x32xf32>
    tpu.vector_store %arg6[%c0_85, %c0_86, %c768], %155 {strides = array<i32>} : memref<1x8x1024xf32, #tpu.memory_space<vmem>>, vector<1x8x32xf32>,
    %156 = vector.extract_strided_slice %55 {offsets = [0, 850], sizes = [8, 32], strides = [1, 1]} : vector<8x1088xf32> to vector<8x32xf32>
    %c0_87 = arith.constant 0 : index
    %c0_88 = arith.constant 0 : index
    %c800 = arith.constant 800 : index
    %157 = vector.load %arg6[%c0_87, %c0_88, %c800] : memref<1x8x1024xf32, #tpu.memory_space<vmem>>, vector<1x8x32xf32>
    %158 = vector.shape_cast %157 : vector<1x8x32xf32> to vector<8x32xf32>
    %159 = vector.shape_cast %156 : vector<8x32xf32> to vector<1x8x32xf32>
    tpu.vector_store %arg6[%c0_87, %c0_88, %c800], %159 {strides = array<i32>} : memref<1x8x1024xf32, #tpu.memory_space<vmem>>, vector<1x8x32xf32>,
    %160 = vector.extract_strided_slice %55 {offsets = [0, 884], sizes = [8, 32], strides = [1, 1]} : vector<8x1088xf32> to vector<8x32xf32>
    %c0_89 = arith.constant 0 : index
    %c0_90 = arith.constant 0 : index
    %c832 = arith.constant 832 : index
    %161 = vector.load %arg6[%c0_89, %c0_90, %c832] : memref<1x8x1024xf32, #tpu.memory_space<vmem>>, vector<1x8x32xf32>
    %162 = vector.shape_cast %161 : vector<1x8x32xf32> to vector<8x32xf32>
    %163 = vector.shape_cast %160 : vector<8x32xf32> to vector<1x8x32xf32>
    tpu.vector_store %arg6[%c0_89, %c0_90, %c832], %163 {strides = array<i32>} : memref<1x8x1024xf32, #tpu.memory_space<vmem>>, vector<1x8x32xf32>,
    %164 = vector.extract_strided_slice %55 {offsets = [0, 918], sizes = [8, 32], strides = [1, 1]} : vector<8x1088xf32> to vector<8x32xf32>
    %c0_91 = arith.constant 0 : index
    %c0_92 = arith.constant 0 : index
    %c864 = arith.constant 864 : index
    %165 = vector.load %arg6[%c0_91, %c0_92, %c864] : memref<1x8x1024xf32, #tpu.memory_space<vmem>>, vector<1x8x32xf32>
    %166 = vector.shape_cast %165 : vector<1x8x32xf32> to vector<8x32xf32>
    %167 = vector.shape_cast %164 : vector<8x32xf32> to vector<1x8x32xf32>
    tpu.vector_store %arg6[%c0_91, %c0_92, %c864], %167 {strides = array<i32>} : memref<1x8x1024xf32, #tpu.memory_space<vmem>>, vector<1x8x32xf32>,
    %168 = vector.extract_strided_slice %55 {offsets = [0, 952], sizes = [8, 32], strides = [1, 1]} : vector<8x1088xf32> to vector<8x32xf32>
    %c0_93 = arith.constant 0 : index
    %c0_94 = arith.constant 0 : index
    %c896 = arith.constant 896 : index
    %169 = vector.load %arg6[%c0_93, %c0_94, %c896] : memref<1x8x1024xf32, #tpu.memory_space<vmem>>, vector<1x8x32xf32>
    %170 = vector.shape_cast %169 : vector<1x8x32xf32> to vector<8x32xf32>
    %171 = vector.shape_cast %168 : vector<8x32xf32> to vector<1x8x32xf32>
    tpu.vector_store %arg6[%c0_93, %c0_94, %c896], %171 {strides = array<i32>} : memref<1x8x1024xf32, #tpu.memory_space<vmem>>, vector<1x8x32xf32>,
    %172 = vector.extract_strided_slice %55 {offsets = [0, 986], sizes = [8, 32], strides = [1, 1]} : vector<8x1088xf32> to vector<8x32xf32>
    %c0_95 = arith.constant 0 : index
    %c0_96 = arith.constant 0 : index
    %c928 = arith.constant 928 : index
    %173 = vector.load %arg6[%c0_95, %c0_96, %c928] : memref<1x8x1024xf32, #tpu.memory_space<vmem>>, vector<1x8x32xf32>
    %174 = vector.shape_cast %173 : vector<1x8x32xf32> to vector<8x32xf32>
    %175 = vector.shape_cast %172 : vector<8x32xf32> to vector<1x8x32xf32>
    tpu.vector_store %arg6[%c0_95, %c0_96, %c928], %175 {strides = array<i32>} : memref<1x8x1024xf32, #tpu.memory_space<vmem>>, vector<1x8x32xf32>,
    %176 = vector.extract_strided_slice %55 {offsets = [0, 1020], sizes = [8, 32], strides = [1, 1]} : vector<8x1088xf32> to vector<8x32xf32>
    %c0_97 = arith.constant 0 : index
    %c0_98 = arith.constant 0 : index
    %c960 = arith.constant 960 : index
    %177 = vector.load %arg6[%c0_97, %c0_98, %c960] : memref<1x8x1024xf32, #tpu.memory_space<vmem>>, vector<1x8x32xf32>
    %178 = vector.shape_cast %177 : vector<1x8x32xf32> to vector<8x32xf32>
    %179 = vector.shape_cast %176 : vector<8x32xf32> to vector<1x8x32xf32>
    tpu.vector_store %arg6[%c0_97, %c0_98, %c960], %179 {strides = array<i32>} : memref<1x8x1024xf32, #tpu.memory_space<vmem>>, vector<1x8x32xf32>,
    %180 = vector.extract_strided_slice %55 {offsets = [0, 1054], sizes = [8, 32], strides = [1, 1]} : vector<8x1088xf32> to vector<8x32xf32>
    %c0_99 = arith.constant 0 : index
    %c0_100 = arith.constant 0 : index
    %c992 = arith.constant 992 : index
    %181 = vector.load %arg6[%c0_99, %c0_100, %c992] : memref<1x8x1024xf32, #tpu.memory_space<vmem>>, vector<1x8x32xf32>
    %182 = vector.shape_cast %181 : vector<1x8x32xf32> to vector<8x32xf32>
    %183 = vector.shape_cast %180 : vector<8x32xf32> to vector<1x8x32xf32>
    tpu.vector_store %arg6[%c0_99, %c0_100, %c992], %183 {strides = array<i32>} : memref<1x8x1024xf32, #tpu.memory_space<vmem>>, vector<1x8x32xf32>,
    return
  }
  func.func @transform_0(%arg0: i32, %arg1: i32) -> (i32, i32, i32) {
    %c0_i32 = arith.constant 0 : i32
    %c0_i32_0 = arith.constant 0 : i32
    return %arg0, %c0_i32, %arg1 : i32, i32, i32
  }
  func.func @transform_1(%arg0: i32, %arg1: i32) -> (i32, i32, i32, i32) {
    %c0_i32 = arith.constant 0 : i32
    %c0_i32_0 = arith.constant 0 : i32
    %c0_i32_1 = arith.constant 0 : i32
    return %arg0, %arg1, %c0_i32, %c0_i32_0 : i32, i32, i32, i32
  }
  func.func @transform_2(%arg0: i32, %arg1: i32) -> (i32, i32, i32) {
    %c0_i32 = arith.constant 0 : i32
    %c0_i32_0 = arith.constant 0 : i32
    %c0_i32_1 = arith.constant 0 : i32
    %c0_i32_2 = arith.constant 0 : i32
    return %c0_i32, %c0_i32_0, %c0_i32_1 : i32, i32, i32
  }
  func.func @transform_3(%arg0: i32, %arg1: i32) -> (i32, i32) {
    %c0_i32 = arith.constant 0 : i32
    %c0_i32_0 = arith.constant 0 : i32
    %c0_i32_1 = arith.constant 0 : i32
    return %c0_i32, %c0_i32_0 : i32, i32
  }
  func.func @transform_4(%arg0: i32, %arg1: i32) -> (i32, i32, i32) {
    %c0_i32 = arith.constant 0 : i32
    %c0_i32_0 = arith.constant 0 : i32
    return %arg0, %c0_i32, %arg1 : i32, i32, i32
  }
}

</mosaic_0001>

<llo_original>
// kernel: deconv_with_activation.1
$region0: #{deconv_with_activation.1}
  #allocation0 [shape = 'u32[]', space=smem, size = 0x4, offset = 0x4, fixed_abs, tag = 'smem constant byte address 0x4 - core index']
  #allocation1 [shape = 'u32[72,128]{1,0:T(1,128)}', space=vmem, size = 0x9000, scoped, tag = 'internal scratch']
  %s0 = inlined_call_operand.vmem [shape: bf16[2,4,1088], index: 0, kind: input, shape index: {}]
  %s1 = inlined_call_operand.vmem [shape: bf16[2,1,4,102], index: 1, kind: input, shape index: {}]
  %s2 = inlined_call_operand.vmem [shape: bf16[9,8,4], index: 2, kind: input, shape index: {}]
  %s3 = inlined_call_operand.vmem [shape: f32[8,1], index: 3, kind: input, shape index: {}]
  %s4 = inlined_call_operand.vmem [shape: f32[2,8,1024], index: 4, kind: output, shape index: {}]
  %s5 = sld [smem:[#allocation0]]
  $region49: #{deconv_with_activation.1} parent=0
    _
  %s7 = ssub.s32 1, %s5
  %s8 = scalar_select 0, %s7, %s5
  loop: start=0, step=1, limit=4
  $region2: #{deconv_with_activation.1} parent=0 // loop_pre_header
    _
  $region3: #{deconv_with_activation.1} parent=0 // loop_header
    %s10 = sphi 0, %s14
    %p11 = scmp.ge.s32.totalorder %s10, 4
    %s17 = sphi 0, %s29
    %s18 = sphi 0, %s25
    %s19 = sphi 0, %s17
    %s20 = sphi 0, %s18
    %s21 = sphi 0, %s19
    %s22 = sphi 0, %s20
    %s34 = sphi 0, %s36
    %s37 = sphi 0, %s34
    %s38 = sphi 0, %s37
    %s54 = sphi 0, %s38
    %s62 = sphi 0, %s64
    %s65 = sphi 0, %s62
    %s66 = sphi 0, %s65
    %s82 = sphi 0, %s66
    %s86 = sphi 0, %s86
    %s88 = sphi 0, %s86
    %s89 = sphi 0, %s88
    %s103 = sphi 0, %s89
    %s107 = sphi 0, %s107
    %s109 = sphi 0, %s107
    %s110 = sphi 0, %s109
    %s124 = sphi 0, %s110
    %s132 = sphi 0, %s134
    %s135 = sphi 0, %s132
    %s136 = sphi 0, %s135
    %s152 = sphi 0, %s136
  $region4: #{deconv_with_activation.1} parent=0 // loop_header_branch
    %13 = sbr.rel (%p11) target = $region8
  $region5: #{deconv_with_activation.1} parent=0 // loop_body
    %s15 = ssub.s32 %s10, 1
    %s16 = ssub.s32 %s10, 2
    %s23 = sadd.s32 1, %s18
    %p24 = scmp.ge.s32.totalorder %s23, 1
    %s25 = scalar_select %p24, 0, %s23
    %s26 = sadd.s32 1, %s17
    %s27 = scalar_select %p24, %s26, %s17
    %p28 = scmp.ge.s32.totalorder %s27, 2
    %s29 = scalar_select %p28, 0, %s27
    %s30 = ssub.s32 %s17, %s29
    %s31 = ssub.s32 %s18, %s25
    %s32 = sor.u32 %s30, %s31
    %p33 = scmp.eq.s32.totalorder %s32, 0
    %s35 = sadd.s32 %s34, 1
    %s36 = scalar_select %p33, %s34, %s35
    %p39 = pneg %p33
    %p40 = scmp.eq.s32.totalorder %s10, 1
    %p41 = por %p39, %p40
    %p42 = scmp.ne.s32.totalorder %s34, %s37
    %p43 = scmp.eq.s32.totalorder %s10, 0
    %p44 = por %p42, %p43
    %p45 = scmp.ne.s32.totalorder %s34, %s37
    %p46 = scmp.eq.s32.totalorder %s15, 1
    %p47 = por %p45, %p46
    %p48 = scmp.ne.s32.totalorder %s37, %s38
    %p49 = scmp.eq.s32.totalorder %s15, 0
    %p50 = por %p48, %p49
    %p51 = scmp.ne.s32.totalorder %s37, %s38
    %p52 = scmp.eq.s32.totalorder %s16, 1
    %p53 = por %p51, %p52
    %p55 = scmp.ne.s32.totalorder %s38, %s54
    %p56 = scmp.eq.s32.totalorder %s16, 0
    %p57 = por %p55, %p56
    %s58 = ssub.s32 %s17, %s29
    %s59 = ssub.s32 %s18, %s25
    %s60 = sor.u32 %s58, %s59
    %p61 = scmp.eq.s32.totalorder %s60, 0
    %s63 = sadd.s32 %s62, 1
    %s64 = scalar_select %p61, %s62, %s63
    %p67 = pneg %p61
    %p68 = scmp.eq.s32.totalorder %s10, 1
    %p69 = por %p67, %p68
    %p70 = scmp.ne.s32.totalorder %s62, %s65
    %p71 = scmp.eq.s32.totalorder %s10, 0
    %p72 = por %p70, %p71
    %p73 = scmp.ne.s32.totalorder %s62, %s65
    %p74 = scmp.eq.s32.totalorder %s15, 1
    %p75 = por %p73, %p74
    %p76 = scmp.ne.s32.totalorder %s65, %s66
    %p77 = scmp.eq.s32.totalorder %s15, 0
    %p78 = por %p76, %p77
    %p79 = scmp.ne.s32.totalorder %s65, %s66
    %p80 = scmp.eq.s32.totalorder %s16, 1
    %p81 = por %p79, %p80
    %p83 = scmp.ne.s32.totalorder %s66, %s82
    %p84 = scmp.eq.s32.totalorder %s16, 0
    %p85 = por %p83, %p84
    %s87 = sadd.s32 %s86, 1
    %p90 = scmp.eq.s32.totalorder %s10, 1
    %p91 = scmp.ne.s32.totalorder %s86, %s88
    %p92 = scmp.eq.s32.totalorder %s10, 0
    %p93 = por %p91, %p92
    %p94 = scmp.ne.s32.totalorder %s86, %s88
    %p95 = scmp.eq.s32.totalorder %s15, 1
    %p96 = por %p94, %p95
    %p97 = scmp.ne.s32.totalorder %s88, %s89
    %p98 = scmp.eq.s32.totalorder %s15, 0
    %p99 = por %p97, %p98
    %p100 = scmp.ne.s32.totalorder %s88, %s89
    %p101 = scmp.eq.s32.totalorder %s16, 1
    %p102 = por %p100, %p101
    %p104 = scmp.ne.s32.totalorder %s89, %s103
    %p105 = scmp.eq.s32.totalorder %s16, 0
    %p106 = por %p104, %p105
    %s108 = sadd.s32 %s107, 1
    %p111 = scmp.eq.s32.totalorder %s10, 1
    %p112 = scmp.ne.s32.totalorder %s107, %s109
    %p113 = scmp.eq.s32.totalorder %s10, 0
    %p114 = por %p112, %p113
    %p115 = scmp.ne.s32.totalorder %s107, %s109
    %p116 = scmp.eq.s32.totalorder %s15, 1
    %p117 = por %p115, %p116
    %p118 = scmp.ne.s32.totalorder %s109, %s110
    %p119 = scmp.eq.s32.totalorder %s15, 0
    %p120 = por %p118, %p119
    %p121 = scmp.ne.s32.totalorder %s109, %s110
    %p122 = scmp.eq.s32.totalorder %s16, 1
    %p123 = por %p121, %p122
    %p125 = scmp.ne.s32.totalorder %s110, %s124
    %p126 = scmp.eq.s32.totalorder %s16, 0
    %p127 = por %p125, %p126
    %s128 = ssub.s32 %s17, %s29
    %s129 = ssub.s32 %s18, %s25
    %s130 = sor.u32 %s128, %s129
    %p131 = scmp.eq.s32.totalorder %s130, 0
    %s133 = sadd.s32 %s132, 1
    %s134 = scalar_select %p131, %s132, %s133
    %p137 = pneg %p131
    %p138 = scmp.eq.s32.totalorder %s10, 1
    %p139 = por %p137, %p138
    %p140 = scmp.ne.s32.totalorder %s132, %s135
    %p141 = scmp.eq.s32.totalorder %s10, 0
    %p142 = por %p140, %p141
    %p143 = scmp.ne.s32.totalorder %s132, %s135
    %p144 = scmp.eq.s32.totalorder %s15, 1
    %p145 = por %p143, %p144
    %p146 = scmp.ne.s32.totalorder %s135, %s136
    %p147 = scmp.eq.s32.totalorder %s15, 0
    %p148 = por %p146, %p147
    %p149 = scmp.ne.s32.totalorder %s135, %s136
    %p150 = scmp.eq.s32.totalorder %s16, 1
    %p151 = por %p149, %p150
    %p153 = scmp.ne.s32.totalorder %s136, %s152
    %p154 = scmp.eq.s32.totalorder %s16, 0
    %p155 = por %p153, %p154
    %p156 = scmp.le.s32.totalorder 1, %s10
    %p157 = scmp.lt.s32.totalorder %s10, 3
    %p158 = pnand %p156, %p157
    %p159 = pneg %p158
    // Predicated region
    $region9: #{deconv_with_activation.1} parent=5 // pred_check
      _
    $region10: #{deconv_with_activation.1} parent=5 // pred_check_branch
      %161 = sbr.rel (%p158) target = $region12
    $region11: #{deconv_with_activation.1} parent=5 // pred_region
      %s162 = ssub.s32 %s10, 1
      // Predicated region
      $region13: #{deconv_with_activation.1} parent=11 // pred_check
        %p163 = pneg %p99
      $region14: #{deconv_with_activation.1} parent=11 // pred_check_branch
        %165 = sbr.rel (%p163) target = $region16
      $region15: #{deconv_with_activation.1} parent=11 // pred_region
        _
      $region16: #{deconv_with_activation.1} parent=11 // pred_fallthru
        _
      // Predicated region
      $region17: #{deconv_with_activation.1} parent=11 // pred_check
        %p166 = pneg %p120
      $region18: #{deconv_with_activation.1} parent=11 // pred_check_branch
        %168 = sbr.rel (%p166) target = $region20
      $region19: #{deconv_with_activation.1} parent=11 // pred_region
        _
      $region20: #{deconv_with_activation.1} parent=11 // pred_fallthru
        _
    $region12: #{deconv_with_activation.1} parent=5 // pred_fallthru
      _
    %p169 = scmp.lt.s32.totalorder %s10, 2
    // Predicated region
    $region21: #{deconv_with_activation.1} parent=5 // pred_check
      %p170 = pneg %p169
    $region22: #{deconv_with_activation.1} parent=5 // pred_check_branch
      %172 = sbr.rel (%p170) target = $region24
    $region23: #{deconv_with_activation.1} parent=5 // pred_region
      // Predicated region
      $region25: #{deconv_with_activation.1} parent=23 // pred_check
        %p173 = pneg %p44
      $region26: #{deconv_with_activation.1} parent=23 // pred_check_branch
        %175 = sbr.rel (%p173) target = $region28
      $region27: #{deconv_with_activation.1} parent=23 // pred_region
        %s176 = smul.u32 9, %s18
        %p177 = scmp.lt.s32.totalorder %s17, 1
        %s178 = scalar_select %p177, %s17, 1
        %p179 = scmp.lt.s32.totalorder %s176, 8
        %s180 = scalar_select %p179, %s176, 8
        %s181 = smul.addr %s178, 9
        %s182 = sadd.s32 %s180, %s181
        %s183 = smul.addr %s182, 2
        %s184 = scalar_lea.vmem %s0, %s183
        %s185 = smul.u32 9, %s18
      $region28: #{deconv_with_activation.1} parent=23 // pred_fallthru
        _
      // Predicated region
      $region29: #{deconv_with_activation.1} parent=23 // pred_check
        %p186 = pneg %p72
      $region30: #{deconv_with_activation.1} parent=23 // pred_check_branch
        %188 = sbr.rel (%p186) target = $region32
      $region31: #{deconv_with_activation.1} parent=23 // pred_region
        %p189 = scmp.lt.s32.totalorder %s17, 1
        %s190 = scalar_select %p189, %s17, 1
        %p191 = scmp.lt.s32.totalorder %s18, 0
        %s192 = scalar_select %p191, %s18, 0
        %s193 = sadd.s32 %s192, %s190
        %s194 = smul.addr %s193, 2
        %s195 = scalar_lea.vmem %s1, %s194
      $region32: #{deconv_with_activation.1} parent=23 // pred_fallthru
        _
    $region24: #{deconv_with_activation.1} parent=5 // pred_fallthru
      _
    %p196 = scmp.le.s32.totalorder 1, %s10
    %p197 = scmp.lt.s32.totalorder %s10, 3
    %p198 = pnand %p196, %p197
    %p199 = pneg %p198
    // Predicated region
    $region33: #{deconv_with_activation.1} parent=5 // pred_check
      _
    $region34: #{deconv_with_activation.1} parent=5 // pred_check_branch
      %201 = sbr.rel (%p198) target = $region36
    $region35: #{deconv_with_activation.1} parent=5 // pred_region
      %s202 = ssub.s32 %s10, 1
      %s203 = smul.u32 9, %s20
      %p204 = scmp.lt.s32.totalorder %s19, 1
      %s205 = scalar_select %p204, %s19, 1
      %p206 = scmp.lt.s32.totalorder %s203, 8
      %s207 = scalar_select %p206, %s203, 8
      %s208 = smul.addr %s205, 9
      %s209 = sadd.s32 %s207, %s208
      %s210 = smul.addr %s209, 2
      %s211 = scalar_lea.vmem %s0, %s210
      %p212 = pneg %p50
      %p213 = pneg %p47
      %p214 = scmp.lt.s32.totalorder %s19, 1
      %s215 = scalar_select %p214, %s19, 1
      %p216 = scmp.lt.s32.totalorder %s20, 0
      %s217 = scalar_select %p216, %s20, 0
      %s218 = sadd.s32 %s217, %s215
      %s219 = smul.addr %s218, 2
      %s220 = scalar_lea.vmem %s1, %s219
      %p221 = pneg %p78
      %p222 = pneg %p75
      %p223 = pneg %p99
      %p224 = pneg %p96
      %p225 = pneg %p120
      %p226 = pneg %p117
      %p227 = pneg %p148
      %p228 = pneg %p145
      %s229 = smul.u32 8, %s20
      %p230 = scmp.lt.s32.totalorder %s19, 1
      %s231 = scalar_select %p230, %s19, 1
      %p232 = scmp.lt.s32.totalorder %s229, 7
      %s233 = scalar_select %p232, %s229, 7
      %s234 = smul.addr %s231, 8
      %s235 = sadd.s32 %s233, %s234
      %s236 = smul.addr %s235, 8
      %s237 = scalar_lea.vmem %s4, %s236
      %s238 = smul.u32 9, %s20
      %p239 = scmp.lt.s32.totalorder %s19, 1
      %s240 = scalar_select %p239, %s19, 1
      %p241 = scmp.lt.s32.totalorder %s238, 8
      %s242 = scalar_select %p241, %s238, 8
      %s243 = smul.addr %s240, 9
      %s244 = sadd.s32 %s242, %s243
      %s245 = smul.addr %s244, 2
      %s246 = scalar_lea.vmem %s0, %s245
      %s247 = smul.u32 9, %s20
      %p248 = scmp.lt.s32.totalorder %s19, 1
      %s249 = scalar_select %p248, %s19, 1
      %p250 = scmp.lt.s32.totalorder %s20, 0
      %s251 = scalar_select %p250, %s20, 0
      %s252 = sadd.s32 %s251, %s249
      %s253 = smul.addr %s252, 2
      %s254 = scalar_lea.vmem %s1, %s253
      %s255 = smul.u32 8, %s20
      %p256 = scmp.lt.s32.totalorder %s19, 1
      %s257 = scalar_select %p256, %s19, 1
      %p258 = scmp.lt.s32.totalorder %s255, 7
      %s259 = scalar_select %p258, %s255, 7
      %s260 = smul.addr %s257, 8
      %s261 = sadd.s32 %s259, %s260
      %s262 = smul.addr %s261, 8
      %s263 = scalar_lea.vmem %s4, %s262
      %s264 = smul.u32 8, %s20
      %v266 = vld [vmem:[%s246] sm:$0xff]
      %v267 = vld [vmem:[%s246 + $0x8] sm:$0xff]
      %v268 = vld [vmem:[%s246 + $0x10] sm:$0x3]
      %v269 = vld [vmem:[%s254] sm:$0x3]
      %271 = vst [vmem:[#allocation1] ss:$4 sm:$0xff] %v266
      %s273 = scalar_lea.vmem [#allocation1], 32
      %274 = vst [vmem:[%s273] ss:$4 sm:$0xff] %v267
      %v275 = vld.sshfl [vmem:[#allocation1] sm:$0xff pattern:$0x73625140]
      %v277 = vld.sshfl [vmem:[#allocation1 + $0x8] sm:$0xff pattern:$0x73625140]
      %v279 = vld.sshfl [vmem:[#allocation1 + $0x10] sm:$0xff pattern:$0x73625140]
      %v281 = vld.sshfl [vmem:[#allocation1 + $0x18] sm:$0xff pattern:$0x73625140]
      %v283 = vld.sshfl [vmem:[#allocation1 + $0x20] sm:$0xff pattern:$0x73625140]
      %v285 = vld.sshfl [vmem:[#allocation1 + $0x28] sm:$0xff pattern:$0x73625140]
      %v287 = vld.sshfl [vmem:[#allocation1 + $0x30] sm:$0xff pattern:$0x73625140]
      %v289 = vld.sshfl [vmem:[#allocation1 + $0x38] sm:$0xff pattern:$0x73625140]
      %292 = vst [vmem:[#allocation1] ss:$4 sm:$0xff] %v268
      %v293 = vld.sshfl [vmem:[#allocation1] sm:$0xff pattern:$0x73625140]
      %295 = vst [vmem:[#allocation1] ss:$4 sm:$0xff] %v269
      %v296 = vld.sshfl [vmem:[#allocation1] sm:$0xff pattern:$0x73625140]
      %298 = vrot.lane.b32.xlu0 %v296, 64
      %v299 = vpop.permute.xlu0 %298
      %vm300 = vcmask 523264
      %v302 = vsel %vm300, %v293, %v299
      %v303 = vld [vmem:[%s3] sm:$0xff]
      %305 = vset.pattern.permute.xlu0 0
      %306 = vperm.xlu0 %305, %v303
      %v307 = vpop.permute.xlu0 %306
      %v309 = vld [vmem:[%s2] sm:$0xf]
      %vm310 = vcmask 31744
      %v312 = vsel %vm310, %v309, 0
      %vm314 = vcmask 1041408
      %v315 = vsel %vm314, %v275, 0
      %v317 = vsel %vm314, %v277, 0
      %v319 = vsel %vm314, %v279, 0
      %v321 = vsel %vm314, %v281, 0
      %v323 = vsel %vm314, %v283, 0
      %v325 = vsel %vm314, %v285, 0
      %v327 = vsel %vm314, %v287, 0
      %v329 = vsel %vm314, %v289, 0
      %v331 = vsel %vm314, %v302, 0
      %333 = vmatpush.bf16.msra.mxu0 0
      %334 = vmatpush.bf16.msra.mxu0 0
      %335 = vmatpush.bf16.msra.mxu0 0
      %336 = vmatpush.bf16.msra.mxu0 0
      %337 = vmatpush.bf16.msra.mxu0 0
      %338 = vmatpush.bf16.msra.mxu0 0
      %339 = vmatpush.bf16.msra.mxu0 0
      %340 = vmatpush.bf16.msra.mxu0 %v315
      %341 = vmatmul.bf16.gmra.mxu0 %v312
      %v342 = vpop.f32.mrf.mxu0
      %v343 = vadd.f32 0.0, %v342
      %v344 = vpop.f32.mrf.mxu0
      %345 = vdwg.mxu0
      %346 = vmatpush.bf16.msra.mxu0 0
      %347 = vmatpush.bf16.msra.mxu0 0
      %348 = vmatpush.bf16.msra.mxu0 0
      %349 = vmatpush.bf16.msra.mxu0 0
      %350 = vmatpush.bf16.msra.mxu0 0
      %351 = vmatpush.bf16.msra.mxu0 0
      %352 = vmatpush.bf16.msra.mxu0 0
      %353 = vmatpush.bf16.msra.mxu0 %v317
      %354 = vmatmul.bf16.gmra.mxu0 %v312
      %v355 = vpop.f32.mrf.mxu0
      %v356 = vadd.f32 0.0, %v355
      %v357 = vpop.f32.mrf.mxu0
      %358 = vdwg.mxu0
      %359 = vmatpush.bf16.msra.mxu0 0
      %360 = vmatpush.bf16.msra.mxu0 0
      %361 = vmatpush.bf16.msra.mxu0 0
      %362 = vmatpush.bf16.msra.mxu0 0
      %363 = vmatpush.bf16.msra.mxu0 0
      %364 = vmatpush.bf16.msra.mxu0 0
      %365 = vmatpush.bf16.msra.mxu0 0
      %366 = vmatpush.bf16.msra.mxu0 %v319
      %367 = vmatmul.bf16.gmra.mxu0 %v312
      %v368 = vpop.f32.mrf.mxu0
      %v369 = vadd.f32 0.0, %v368
      %v370 = vpop.f32.mrf.mxu0
      %371 = vdwg.mxu0
      %372 = vmatpush.bf16.msra.mxu0 0
      %373 = vmatpush.bf16.msra.mxu0 0
      %374 = vmatpush.bf16.msra.mxu0 0
      %375 = vmatpush.bf16.msra.mxu0 0
      %376 = vmatpush.bf16.msra.mxu0 0
      %377 = vmatpush.bf16.msra.mxu0 0
      %378 = vmatpush.bf16.msra.mxu0 0
      %379 = vmatpush.bf16.msra.mxu0 %v321
      %380 = vmatmul.bf16.gmra.mxu0 %v312
      %v381 = vpop.f32.mrf.mxu0
      %v382 = vadd.f32 0.0, %v381
      %v383 = vpop.f32.mrf.mxu0
      %384 = vdwg.mxu0
      %385 = vmatpush.bf16.msra.mxu0 0
      %386 = vmatpush.bf16.msra.mxu0 0
      %387 = vmatpush.bf16.msra.mxu0 0
      %388 = vmatpush.bf16.msra.mxu0 0
      %389 = vmatpush.bf16.msra.mxu0 0
      %390 = vmatpush.bf16.msra.mxu0 0
      %391 = vmatpush.bf16.msra.mxu0 0
      %392 = vmatpush.bf16.msra.mxu0 %v323
      %393 = vmatmul.bf16.gmra.mxu0 %v312
      %v394 = vpop.f32.mrf.mxu0
      %v395 = vadd.f32 0.0, %v394
      %v396 = vpop.f32.mrf.mxu0
      %397 = vdwg.mxu0
      %398 = vmatpush.bf16.msra.mxu0 0
      %399 = vmatpush.bf16.msra.mxu0 0
      %400 = vmatpush.bf16.msra.mxu0 0
      %401 = vmatpush.bf16.msra.mxu0 0
      %402 = vmatpush.bf16.msra.mxu0 0
      %403 = vmatpush.bf16.msra.mxu0 0
      %404 = vmatpush.bf16.msra.mxu0 0
      %405 = vmatpush.bf16.msra.mxu0 %v325
      %406 = vmatmul.bf16.gmra.mxu0 %v312
      %v407 = vpop.f32.mrf.mxu0
      %v408 = vadd.f32 0.0, %v407
      %v409 = vpop.f32.mrf.mxu0
      %410 = vdwg.mxu0
      %411 = vmatpush.bf16.msra.mxu0 0
      %412 = vmatpush.bf16.msra.mxu0 0
      %413 = vmatpush.bf16.msra.mxu0 0
      %414 = vmatpush.bf16.msra.mxu0 0
      %415 = vmatpush.bf16.msra.mxu0 0
      %416 = vmatpush.bf16.msra.mxu0 0
      %417 = vmatpush.bf16.msra.mxu0 0
      %418 = vmatpush.bf16.msra.mxu0 %v327
      %419 = vmatmul.bf16.gmra.mxu0 %v312
      %v420 = vpop.f32.mrf.mxu0
      %v421 = vadd.f32 0.0, %v420
      %v422 = vpop.f32.mrf.mxu0
      %423 = vdwg.mxu0
      %424 = vmatpush.bf16.msra.mxu0 0
      %425 = vmatpush.bf16.msra.mxu0 0
      %426 = vmatpush.bf16.msra.mxu0 0
      %427 = vmatpush.bf16.msra.mxu0 0
      %428 = vmatpush.bf16.msra.mxu0 0
      %429 = vmatpush.bf16.msra.mxu0 0
      %430 = vmatpush.bf16.msra.mxu0 0
      %431 = vmatpush.bf16.msra.mxu0 %v329
      %432 = vmatmul.bf16.gmra.mxu0 %v312
      %v433 = vpop.f32.mrf.mxu0
      %v434 = vadd.f32 0.0, %v433
      %v435 = vpop.f32.mrf.mxu0
      %436 = vdwg.mxu0
      %437 = vmatpush.bf16.msra.mxu0 0
      %438 = vmatpush.bf16.msra.mxu0 0
      %439 = vmatpush.bf16.msra.mxu0 0
      %440 = vmatpush.bf16.msra.mxu0 0
      %441 = vmatpush.bf16.msra.mxu0 0
      %442 = vmatpush.bf16.msra.mxu0 0
      %443 = vmatpush.bf16.msra.mxu0 0
      %444 = vmatpush.bf16.msra.mxu0 %v331
      %445 = vmatmul.bf16.gmra.mxu0 %v312
      %v446 = vpop.f32.mrf.mxu0
      %v447 = vadd.f32 0.0, %v446
      %v448 = vpop.f32.mrf.mxu0
      %449 = vdwg.mxu0
      %v450 = vadd.f32 %v307, %v343
      %v451 = vadd.f32 %v307, %v356
      %v452 = vadd.f32 %v307, %v369
      %v453 = vadd.f32 %v307, %v382
      %v454 = vadd.f32 %v307, %v395
      %v455 = vadd.f32 %v307, %v408
      %v456 = vadd.f32 %v307, %v421
      %v457 = vadd.f32 %v307, %v434
      %v458 = vadd.f32 %v307, %v447
      %s459 = scalar_lea.vmem %s2, 4
      %v460 = vld [vmem:[%s459] sm:$0xf]
      %462 = vrot.lane.b32.xlu0 %v275, 127
      %v463 = vpop.permute.xlu0 %462
      %464 = vrot.lane.b32.xlu0 %v277, 127
      %v465 = vpop.permute.xlu0 %464
      %466 = vrot.lane.b32.xlu0 %v279, 127
      %v467 = vpop.permute.xlu0 %466
      %468 = vrot.lane.b32.xlu0 %v281, 127
      %v469 = vpop.permute.xlu0 %468
      %470 = vrot.lane.b32.xlu0 %v283, 127
      %v471 = vpop.permute.xlu0 %470
      %472 = vrot.lane.b32.xlu0 %v285, 127
      %v473 = vpop.permute.xlu0 %472
      %474 = vrot.lane.b32.xlu0 %v287, 127
      %v475 = vpop.permute.xlu0 %474
      %476 = vrot.lane.b32.xlu0 %v289, 127
      %v477 = vpop.permute.xlu0 %476
      %478 = vrot.lane.b32.xlu0 %v302, 127
      %v479 = vpop.permute.xlu0 %478
      %vm480 = vcmask 1039360
      %v481 = vsel %vm480, %v463, %v465
      %v482 = vsel %vm480, %v465, %v467
      %v483 = vsel %vm480, %v467, %v469
      %v484 = vsel %vm480, %v469, %v471
      %v485 = vsel %vm480, %v471, %v473
      %v486 = vsel %vm480, %v473, %v475
      %v487 = vsel %vm480, %v475, %v477
      %v488 = vsel %vm480, %v477, %v479
      %v490 = vsel %vm310, %v460, 0
      %v493 = vsel %vm314, %v481, 0
      %v496 = vsel %vm314, %v482, 0
      %v499 = vsel %vm314, %v483, 0
      %v502 = vsel %vm314, %v484, 0
      %v505 = vsel %vm314, %v485, 0
      %v508 = vsel %vm314, %v486, 0
      %v511 = vsel %vm314, %v487, 0
      %v514 = vsel %vm314, %v488, 0
      %v517 = vsel %vm314, %v479, 0
      %519 = vmatpush.bf16.msra.mxu0 0
      %520 = vmatpush.bf16.msra.mxu0 0
      %521 = vmatpush.bf16.msra.mxu0 0
      %522 = vmatpush.bf16.msra.mxu0 0
      %523 = vmatpush.bf16.msra.mxu0 0
      %524 = vmatpush.bf16.msra.mxu0 0
      %525 = vmatpush.bf16.msra.mxu0 0
      %526 = vmatpush.bf16.msra.mxu0 %v493
      %527 = vmatmul.bf16.gmra.mxu0 %v490
      %v528 = vpop.f32.mrf.mxu0
      %v529 = vadd.f32 0.0, %v528
      %v530 = vpop.f32.mrf.mxu0
      %531 = vdwg.mxu0
      %532 = vmatpush.bf16.msra.mxu0 0
      %533 = vmatpush.bf16.msra.mxu0 0
      %534 = vmatpush.bf16.msra.mxu0 0
      %535 = vmatpush.bf16.msra.mxu0 0
      %536 = vmatpush.bf16.msra.mxu0 0
      %537 = vmatpush.bf16.msra.mxu0 0
      %538 = vmatpush.bf16.msra.mxu0 0
      %539 = vmatpush.bf16.msra.mxu0 %v496
      %540 = vmatmul.bf16.gmra.mxu0 %v490
      %v541 = vpop.f32.mrf.mxu0
      %v542 = vadd.f32 0.0, %v541
      %v543 = vpop.f32.mrf.mxu0
      %544 = vdwg.mxu0
      %545 = vmatpush.bf16.msra.mxu0 0
      %546 = vmatpush.bf16.msra.mxu0 0
      %547 = vmatpush.bf16.msra.mxu0 0
      %548 = vmatpush.bf16.msra.mxu0 0
      %549 = vmatpush.bf16.msra.mxu0 0
      %550 = vmatpush.bf16.msra.mxu0 0
      %551 = vmatpush.bf16.msra.mxu0 0
      %552 = vmatpush.bf16.msra.mxu0 %v499
      %553 = vmatmul.bf16.gmra.mxu0 %v490
      %v554 = vpop.f32.mrf.mxu0
      %v555 = vadd.f32 0.0, %v554
      %v556 = vpop.f32.mrf.mxu0
      %557 = vdwg.mxu0
      %558 = vmatpush.bf16.msra.mxu0 0
      %559 = vmatpush.bf16.msra.mxu0 0
      %560 = vmatpush.bf16.msra.mxu0 0
      %561 = vmatpush.bf16.msra.mxu0 0
      %562 = vmatpush.bf16.msra.mxu0 0
      %563 = vmatpush.bf16.msra.mxu0 0
      %564 = vmatpush.bf16.msra.mxu0 0
      %565 = vmatpush.bf16.msra.mxu0 %v502
      %566 = vmatmul.bf16.gmra.mxu0 %v490
      %v567 = vpop.f32.mrf.mxu0
      %v568 = vadd.f32 0.0, %v567
      %v569 = vpop.f32.mrf.mxu0
      %570 = vdwg.mxu0
      %571 = vmatpush.bf16.msra.mxu0 0
      %572 = vmatpush.bf16.msra.mxu0 0
      %573 = vmatpush.bf16.msra.mxu0 0
      %574 = vmatpush.bf16.msra.mxu0 0
      %575 = vmatpush.bf16.msra.mxu0 0
      %576 = vmatpush.bf16.msra.mxu0 0
      %577 = vmatpush.bf16.msra.mxu0 0
      %578 = vmatpush.bf16.msra.mxu0 %v505
      %579 = vmatmul.bf16.gmra.mxu0 %v490
      %v580 = vpop.f32.mrf.mxu0
      %v581 = vadd.f32 0.0, %v580
      %v582 = vpop.f32.mrf.mxu0
      %583 = vdwg.mxu0
      %584 = vmatpush.bf16.msra.mxu0 0
      %585 = vmatpush.bf16.msra.mxu0 0
      %586 = vmatpush.bf16.msra.mxu0 0
      %587 = vmatpush.bf16.msra.mxu0 0
      %588 = vmatpush.bf16.msra.mxu0 0
      %589 = vmatpush.bf16.msra.mxu0 0
      %590 = vmatpush.bf16.msra.mxu0 0
      %591 = vmatpush.bf16.msra.mxu0 %v508
      %592 = vmatmul.bf16.gmra.mxu0 %v490
      %v593 = vpop.f32.mrf.mxu0
      %v594 = vadd.f32 0.0, %v593
      %v595 = vpop.f32.mrf.mxu0
      %596 = vdwg.mxu0
      %597 = vmatpush.bf16.msra.mxu0 0
      %598 = vmatpush.bf16.msra.mxu0 0
      %599 = vmatpush.bf16.msra.mxu0 0
      %600 = vmatpush.bf16.msra.mxu0 0
      %601 = vmatpush.bf16.msra.mxu0 0
      %602 = vmatpush.bf16.msra.mxu0 0
      %603 = vmatpush.bf16.msra.mxu0 0
      %604 = vmatpush.bf16.msra.mxu0 %v511
      %605 = vmatmul.bf16.gmra.mxu0 %v490
      %v606 = vpop.f32.mrf.mxu0
      %v607 = vadd.f32 0.0, %v606
      %v608 = vpop.f32.mrf.mxu0
      %609 = vdwg.mxu0
      %610 = vmatpush.bf16.msra.mxu0 0
      %611 = vmatpush.bf16.msra.mxu0 0
      %612 = vmatpush.bf16.msra.mxu0 0
      %613 = vmatpush.bf16.msra.mxu0 0
      %614 = vmatpush.bf16.msra.mxu0 0
      %615 = vmatpush.bf16.msra.mxu0 0
      %616 = vmatpush.bf16.msra.mxu0 0
      %617 = vmatpush.bf16.msra.mxu0 %v514
      %618 = vmatmul.bf16.gmra.mxu0 %v490
      %v619 = vpop.f32.mrf.mxu0
      %v620 = vadd.f32 0.0, %v619
      %v621 = vpop.f32.mrf.mxu0
      %622 = vdwg.mxu0
      %623 = vmatpush.bf16.msra.mxu0 0
      %624 = vmatpush.bf16.msra.mxu0 0
      %625 = vmatpush.bf16.msra.mxu0 0
      %626 = vmatpush.bf16.msra.mxu0 0
      %627 = vmatpush.bf16.msra.mxu0 0
      %628 = vmatpush.bf16.msra.mxu0 0
      %629 = vmatpush.bf16.msra.mxu0 0
      %630 = vmatpush.bf16.msra.mxu0 %v517
      %631 = vmatmul.bf16.gmra.mxu0 %v490
      %v632 = vpop.f32.mrf.mxu0
      %v633 = vadd.f32 0.0, %v632
      %v634 = vpop.f32.mrf.mxu0
      %635 = vdwg.mxu0
      %v636 = vadd.f32 %v450, %v529
      %v637 = vadd.f32 %v451, %v542
      %v638 = vadd.f32 %v452, %v555
      %v639 = vadd.f32 %v453, %v568
      %v640 = vadd.f32 %v454, %v581
      %v641 = vadd.f32 %v455, %v594
      %v642 = vadd.f32 %v456, %v607
      %v643 = vadd.f32 %v457, %v620
      %v644 = vadd.f32 %v458, %v633
      %s645 = scalar_lea.vmem %s2, 8
      %v646 = vld [vmem:[%s645] sm:$0xf]
      %647 = vrot.lane.b32.xlu0 %v275, 126
      %v648 = vpop.permute.xlu0 %647
      %649 = vrot.lane.b32.xlu0 %v277, 126
      %v650 = vpop.permute.xlu0 %649
      %651 = vrot.lane.b32.xlu0 %v279, 126
      %v652 = vpop.permute.xlu0 %651
      %653 = vrot.lane.b32.xlu0 %v281, 126
      %v654 = vpop.permute.xlu0 %653
      %655 = vrot.lane.b32.xlu0 %v283, 126
      %v656 = vpop.permute.xlu0 %655
      %657 = vrot.lane.b32.xlu0 %v285, 126
      %v658 = vpop.permute.xlu0 %657
      %659 = vrot.lane.b32.xlu0 %v287, 126
      %v660 = vpop.permute.xlu0 %659
      %661 = vrot.lane.b32.xlu0 %v289, 126
      %v662 = vpop.permute.xlu0 %661
      %663 = vrot.lane.b32.xlu0 %v302, 126
      %v664 = vpop.permute.xlu0 %663
      %vm665 = vcmask 1031168
      %v666 = vsel %vm665, %v648, %v650
      %v667 = vsel %vm665, %v650, %v652
      %v668 = vsel %vm665, %v652, %v654
      %v669 = vsel %vm665, %v654, %v656
      %v670 = vsel %vm665, %v656, %v658
      %v671 = vsel %vm665, %v658, %v660
      %v672 = vsel %vm665, %v660, %v662
      %v673 = vsel %vm665, %v662, %v664
      %v675 = vsel %vm310, %v646, 0
      %v678 = vsel %vm314, %v666, 0
      %v681 = vsel %vm314, %v667, 0
      %v684 = vsel %vm314, %v668, 0
      %v687 = vsel %vm314, %v669, 0
      %v690 = vsel %vm314, %v670, 0
      %v693 = vsel %vm314, %v671, 0
      %v696 = vsel %vm314, %v672, 0
      %v699 = vsel %vm314, %v673, 0
      %v702 = vsel %vm314, %v664, 0
      %704 = vmatpush.bf16.msra.mxu0 0
      %705 = vmatpush.bf16.msra.mxu0 0
      %706 = vmatpush.bf16.msra.mxu0 0
      %707 = vmatpush.bf16.msra.mxu0 0
      %708 = vmatpush.bf16.msra.mxu0 0
      %709 = vmatpush.bf16.msra.mxu0 0
      %710 = vmatpush.bf16.msra.mxu0 0
      %711 = vmatpush.bf16.msra.mxu0 %v678
      %712 = vmatmul.bf16.gmra.mxu0 %v675
      %v713 = vpop.f32.mrf.mxu0
      %v714 = vadd.f32 0.0, %v713
      %v715 = vpop.f32.mrf.mxu0
      %716 = vdwg.mxu0
      %717 = vmatpush.bf16.msra.mxu0 0
      %718 = vmatpush.bf16.msra.mxu0 0
      %719 = vmatpush.bf16.msra.mxu0 0
      %720 = vmatpush.bf16.msra.mxu0 0
      %721 = vmatpush.bf16.msra.mxu0 0
      %722 = vmatpush.bf16.msra.mxu0 0
      %723 = vmatpush.bf16.msra.mxu0 0
      %724 = vmatpush.bf16.msra.mxu0 %v681
      %725 = vmatmul.bf16.gmra.mxu0 %v675
      %v726 = vpop.f32.mrf.mxu0
      %v727 = vadd.f32 0.0, %v726
      %v728 = vpop.f32.mrf.mxu0
      %729 = vdwg.mxu0
      %730 = vmatpush.bf16.msra.mxu0 0
      %731 = vmatpush.bf16.msra.mxu0 0
      %732 = vmatpush.bf16.msra.mxu0 0
      %733 = vmatpush.bf16.msra.mxu0 0
      %734 = vmatpush.bf16.msra.mxu0 0
      %735 = vmatpush.bf16.msra.mxu0 0
      %736 = vmatpush.bf16.msra.mxu0 0
      %737 = vmatpush.bf16.msra.mxu0 %v684
      %738 = vmatmul.bf16.gmra.mxu0 %v675
      %v739 = vpop.f32.mrf.mxu0
      %v740 = vadd.f32 0.0, %v739
      %v741 = vpop.f32.mrf.mxu0
      %742 = vdwg.mxu0
      %743 = vmatpush.bf16.msra.mxu0 0
      %744 = vmatpush.bf16.msra.mxu0 0
      %745 = vmatpush.bf16.msra.mxu0 0
      %746 = vmatpush.bf16.msra.mxu0 0
      %747 = vmatpush.bf16.msra.mxu0 0
      %748 = vmatpush.bf16.msra.mxu0 0
      %749 = vmatpush.bf16.msra.mxu0 0
      %750 = vmatpush.bf16.msra.mxu0 %v687
      %751 = vmatmul.bf16.gmra.mxu0 %v675
      %v752 = vpop.f32.mrf.mxu0
      %v753 = vadd.f32 0.0, %v752
      %v754 = vpop.f32.mrf.mxu0
      %755 = vdwg.mxu0
      %756 = vmatpush.bf16.msra.mxu0 0
      %757 = vmatpush.bf16.msra.mxu0 0
      %758 = vmatpush.bf16.msra.mxu0 0
      %759 = vmatpush.bf16.msra.mxu0 0
      %760 = vmatpush.bf16.msra.mxu0 0
      %761 = vmatpush.bf16.msra.mxu0 0
      %762 = vmatpush.bf16.msra.mxu0 0
      %763 = vmatpush.bf16.msra.mxu0 %v690
      %764 = vmatmul.bf16.gmra.mxu0 %v675
      %v765 = vpop.f32.mrf.mxu0
      %v766 = vadd.f32 0.0, %v765
      %v767 = vpop.f32.mrf.mxu0
      %768 = vdwg.mxu0
      %769 = vmatpush.bf16.msra.mxu0 0
      %770 = vmatpush.bf16.msra.mxu0 0
      %771 = vmatpush.bf16.msra.mxu0 0
      %772 = vmatpush.bf16.msra.mxu0 0
      %773 = vmatpush.bf16.msra.mxu0 0
      %774 = vmatpush.bf16.msra.mxu0 0
      %775 = vmatpush.bf16.msra.mxu0 0
      %776 = vmatpush.bf16.msra.mxu0 %v693
      %777 = vmatmul.bf16.gmra.mxu0 %v675
      %v778 = vpop.f32.mrf.mxu0
      %v779 = vadd.f32 0.0, %v778
      %v780 = vpop.f32.mrf.mxu0
      %781 = vdwg.mxu0
      %782 = vmatpush.bf16.msra.mxu0 0
      %783 = vmatpush.bf16.msra.mxu0 0
      %784 = vmatpush.bf16.msra.mxu0 0
      %785 = vmatpush.bf16.msra.mxu0 0
      %786 = vmatpush.bf16.msra.mxu0 0
      %787 = vmatpush.bf16.msra.mxu0 0
      %788 = vmatpush.bf16.msra.mxu0 0
      %789 = vmatpush.bf16.msra.mxu0 %v696
      %790 = vmatmul.bf16.gmra.mxu0 %v675
      %v791 = vpop.f32.mrf.mxu0
      %v792 = vadd.f32 0.0, %v791
      %v793 = vpop.f32.mrf.mxu0
      %794 = vdwg.mxu0
      %795 = vmatpush.bf16.msra.mxu0 0
      %796 = vmatpush.bf16.msra.mxu0 0
      %797 = vmatpush.bf16.msra.mxu0 0
      %798 = vmatpush.bf16.msra.mxu0 0
      %799 = vmatpush.bf16.msra.mxu0 0
      %800 = vmatpush.bf16.msra.mxu0 0
      %801 = vmatpush.bf16.msra.mxu0 0
      %802 = vmatpush.bf16.msra.mxu0 %v699
      %803 = vmatmul.bf16.gmra.mxu0 %v675
      %v804 = vpop.f32.mrf.mxu0
      %v805 = vadd.f32 0.0, %v804
      %v806 = vpop.f32.mrf.mxu0
      %807 = vdwg.mxu0
      %808 = vmatpush.bf16.msra.mxu0 0
      %809 = vmatpush.bf16.msra.mxu0 0
      %810 = vmatpush.bf16.msra.mxu0 0
      %811 = vmatpush.bf16.msra.mxu0 0
      %812 = vmatpush.bf16.msra.mxu0 0
      %813 = vmatpush.bf16.msra.mxu0 0
      %814 = vmatpush.bf16.msra.mxu0 0
      %815 = vmatpush.bf16.msra.mxu0 %v702
      %816 = vmatmul.bf16.gmra.mxu0 %v675
      %v817 = vpop.f32.mrf.mxu0
      %v818 = vadd.f32 0.0, %v817
      %v819 = vpop.f32.mrf.mxu0
      %820 = vdwg.mxu0
      %v821 = vadd.f32 %v636, %v714
      %v822 = vadd.f32 %v637, %v727
      %v823 = vadd.f32 %v638, %v740
      %v824 = vadd.f32 %v639, %v753
      %v825 = vadd.f32 %v640, %v766
      %v826 = vadd.f32 %v641, %v779
      %v827 = vadd.f32 %v642, %v792
      %v828 = vadd.f32 %v643, %v805
      %v829 = vadd.f32 %v644, %v818
      %s830 = scalar_lea.vmem %s2, 12
      %v831 = vld [vmem:[%s830] sm:$0xf]
      %832 = vrot.lane.b32.xlu0 %v275, 94
      %v833 = vpop.permute.xlu0 %832
      %834 = vrot.lane.b32.xlu0 %v277, 94
      %v835 = vpop.permute.xlu0 %834
      %836 = vrot.lane.b32.xlu0 %v279, 94
      %v837 = vpop.permute.xlu0 %836
      %838 = vrot.lane.b32.xlu0 %v281, 94
      %v839 = vpop.permute.xlu0 %838
      %840 = vrot.lane.b32.xlu0 %v283, 94
      %v841 = vpop.permute.xlu0 %840
      %842 = vrot.lane.b32.xlu0 %v285, 94
      %v843 = vpop.permute.xlu0 %842
      %844 = vrot.lane.b32.xlu0 %v287, 94
      %v845 = vpop.permute.xlu0 %844
      %846 = vrot.lane.b32.xlu0 %v289, 94
      %v847 = vpop.permute.xlu0 %846
      %848 = vrot.lane.b32.xlu0 %v302, 94
      %v849 = vpop.permute.xlu0 %848
      %vm850 = vcmask 769024
      %v851 = vsel %vm850, %v833, %v835
      %v852 = vsel %vm850, %v835, %v837
      %v853 = vsel %vm850, %v837, %v839
      %v854 = vsel %vm850, %v839, %v841
      %v855 = vsel %vm850, %v841, %v843
      %v856 = vsel %vm850, %v843, %v845
      %v857 = vsel %vm850, %v845, %v847
      %v858 = vsel %vm850, %v847, %v849
      %v860 = vsel %vm310, %v831, 0
      %v863 = vsel %vm314, %v851, 0
      %v866 = vsel %vm314, %v852, 0
      %v869 = vsel %vm314, %v853, 0
      %v872 = vsel %vm314, %v854, 0
      %v875 = vsel %vm314, %v855, 0
      %v878 = vsel %vm314, %v856, 0
      %v881 = vsel %vm314, %v857, 0
      %v884 = vsel %vm314, %v858, 0
      %v887 = vsel %vm314, %v849, 0
      %889 = vmatpush.bf16.msra.mxu0 0
      %890 = vmatpush.bf16.msra.mxu0 0
      %891 = vmatpush.bf16.msra.mxu0 0
      %892 = vmatpush.bf16.msra.mxu0 0
      %893 = vmatpush.bf16.msra.mxu0 0
      %894 = vmatpush.bf16.msra.mxu0 0
      %895 = vmatpush.bf16.msra.mxu0 0
      %896 = vmatpush.bf16.msra.mxu0 %v863
      %897 = vmatmul.bf16.gmra.mxu0 %v860
      %v898 = vpop.f32.mrf.mxu0
      %v899 = vadd.f32 0.0, %v898
      %v900 = vpop.f32.mrf.mxu0
      %901 = vdwg.mxu0
      %902 = vmatpush.bf16.msra.mxu0 0
      %903 = vmatpush.bf16.msra.mxu0 0
      %904 = vmatpush.bf16.msra.mxu0 0
      %905 = vmatpush.bf16.msra.mxu0 0
      %906 = vmatpush.bf16.msra.mxu0 0
      %907 = vmatpush.bf16.msra.mxu0 0
      %908 = vmatpush.bf16.msra.mxu0 0
      %909 = vmatpush.bf16.msra.mxu0 %v866
      %910 = vmatmul.bf16.gmra.mxu0 %v860
      %v911 = vpop.f32.mrf.mxu0
      %v912 = vadd.f32 0.0, %v911
      %v913 = vpop.f32.mrf.mxu0
      %914 = vdwg.mxu0
      %915 = vmatpush.bf16.msra.mxu0 0
      %916 = vmatpush.bf16.msra.mxu0 0
      %917 = vmatpush.bf16.msra.mxu0 0
      %918 = vmatpush.bf16.msra.mxu0 0
      %919 = vmatpush.bf16.msra.mxu0 0
      %920 = vmatpush.bf16.msra.mxu0 0
      %921 = vmatpush.bf16.msra.mxu0 0
      %922 = vmatpush.bf16.msra.mxu0 %v869
      %923 = vmatmul.bf16.gmra.mxu0 %v860
      %v924 = vpop.f32.mrf.mxu0
      %v925 = vadd.f32 0.0, %v924
      %v926 = vpop.f32.mrf.mxu0
      %927 = vdwg.mxu0
      %928 = vmatpush.bf16.msra.mxu0 0
      %929 = vmatpush.bf16.msra.mxu0 0
      %930 = vmatpush.bf16.msra.mxu0 0
      %931 = vmatpush.bf16.msra.mxu0 0
      %932 = vmatpush.bf16.msra.mxu0 0
      %933 = vmatpush.bf16.msra.mxu0 0
      %934 = vmatpush.bf16.msra.mxu0 0
      %935 = vmatpush.bf16.msra.mxu0 %v872
      %936 = vmatmul.bf16.gmra.mxu0 %v860
      %v937 = vpop.f32.mrf.mxu0
      %v938 = vadd.f32 0.0, %v937
      %v939 = vpop.f32.mrf.mxu0
      %940 = vdwg.mxu0
      %941 = vmatpush.bf16.msra.mxu0 0
      %942 = vmatpush.bf16.msra.mxu0 0
      %943 = vmatpush.bf16.msra.mxu0 0
      %944 = vmatpush.bf16.msra.mxu0 0
      %945 = vmatpush.bf16.msra.mxu0 0
      %946 = vmatpush.bf16.msra.mxu0 0
      %947 = vmatpush.bf16.msra.mxu0 0
      %948 = vmatpush.bf16.msra.mxu0 %v875
      %949 = vmatmul.bf16.gmra.mxu0 %v860
      %v950 = vpop.f32.mrf.mxu0
      %v951 = vadd.f32 0.0, %v950
      %v952 = vpop.f32.mrf.mxu0
      %953 = vdwg.mxu0
      %954 = vmatpush.bf16.msra.mxu0 0
      %955 = vmatpush.bf16.msra.mxu0 0
      %956 = vmatpush.bf16.msra.mxu0 0
      %957 = vmatpush.bf16.msra.mxu0 0
      %958 = vmatpush.bf16.msra.mxu0 0
      %959 = vmatpush.bf16.msra.mxu0 0
      %960 = vmatpush.bf16.msra.mxu0 0
      %961 = vmatpush.bf16.msra.mxu0 %v878
      %962 = vmatmul.bf16.gmra.mxu0 %v860
      %v963 = vpop.f32.mrf.mxu0
      %v964 = vadd.f32 0.0, %v963
      %v965 = vpop.f32.mrf.mxu0
      %966 = vdwg.mxu0
      %967 = vmatpush.bf16.msra.mxu0 0
      %968 = vmatpush.bf16.msra.mxu0 0
      %969 = vmatpush.bf16.msra.mxu0 0
      %970 = vmatpush.bf16.msra.mxu0 0
      %971 = vmatpush.bf16.msra.mxu0 0
      %972 = vmatpush.bf16.msra.mxu0 0
      %973 = vmatpush.bf16.msra.mxu0 0
      %974 = vmatpush.bf16.msra.mxu0 %v881
      %975 = vmatmul.bf16.gmra.mxu0 %v860
      %v976 = vpop.f32.mrf.mxu0
      %v977 = vadd.f32 0.0, %v976
      %v978 = vpop.f32.mrf.mxu0
      %979 = vdwg.mxu0
      %980 = vmatpush.bf16.msra.mxu0 0
      %981 = vmatpush.bf16.msra.mxu0 0
      %982 = vmatpush.bf16.msra.mxu0 0
      %983 = vmatpush.bf16.msra.mxu0 0
      %984 = vmatpush.bf16.msra.mxu0 0
      %985 = vmatpush.bf16.msra.mxu0 0
      %986 = vmatpush.bf16.msra.mxu0 0
      %987 = vmatpush.bf16.msra.mxu0 %v884
      %988 = vmatmul.bf16.gmra.mxu0 %v860
      %v989 = vpop.f32.mrf.mxu0
      %v990 = vadd.f32 0.0, %v989
      %v991 = vpop.f32.mrf.mxu0
      %992 = vdwg.mxu0
      %993 = vmatpush.bf16.msra.mxu0 0
      %994 = vmatpush.bf16.msra.mxu0 0
      %995 = vmatpush.bf16.msra.mxu0 0
      %996 = vmatpush.bf16.msra.mxu0 0
      %997 = vmatpush.bf16.msra.mxu0 0
      %998 = vmatpush.bf16.msra.mxu0 0
      %999 = vmatpush.bf16.msra.mxu0 0
      %1000 = vmatpush.bf16.msra.mxu0 %v887
      %1001 = vmatmul.bf16.gmra.mxu0 %v860
      %v1002 = vpop.f32.mrf.mxu0
      %v1003 = vadd.f32 0.0, %v1002
      %v1004 = vpop.f32.mrf.mxu0
      %1005 = vdwg.mxu0
      %v1006 = vadd.f32 %v821, %v899
      %v1007 = vadd.f32 %v822, %v912
      %v1008 = vadd.f32 %v823, %v925
      %v1009 = vadd.f32 %v824, %v938
      %v1010 = vadd.f32 %v825, %v951
      %v1011 = vadd.f32 %v826, %v964
      %v1012 = vadd.f32 %v827, %v977
      %v1013 = vadd.f32 %v828, %v990
      %v1014 = vadd.f32 %v829, %v1003
      %s1015 = scalar_lea.vmem %s2, 16
      %v1016 = vld [vmem:[%s1015] sm:$0xf]
      %1017 = vrot.lane.b32.xlu0 %v275, 93
      %v1018 = vpop.permute.xlu0 %1017
      %1019 = vrot.lane.b32.xlu0 %v277, 93
      %v1020 = vpop.permute.xlu0 %1019
      %1021 = vrot.lane.b32.xlu0 %v279, 93
      %v1022 = vpop.permute.xlu0 %1021
      %1023 = vrot.lane.b32.xlu0 %v281, 93
      %v1024 = vpop.permute.xlu0 %1023
      %1025 = vrot.lane.b32.xlu0 %v283, 93
      %v1026 = vpop.permute.xlu0 %1025
      %1027 = vrot.lane.b32.xlu0 %v285, 93
      %v1028 = vpop.permute.xlu0 %1027
      %1029 = vrot.lane.b32.xlu0 %v287, 93
      %v1030 = vpop.permute.xlu0 %1029
      %1031 = vrot.lane.b32.xlu0 %v289, 93
      %v1032 = vpop.permute.xlu0 %1031
      %1033 = vrot.lane.b32.xlu0 %v302, 93
      %v1034 = vpop.permute.xlu0 %1033
      %vm1035 = vcmask 760832
      %v1036 = vsel %vm1035, %v1018, %v1020
      %v1037 = vsel %vm1035, %v1020, %v1022
      %v1038 = vsel %vm1035, %v1022, %v1024
      %v1039 = vsel %vm1035, %v1024, %v1026
      %v1040 = vsel %vm1035, %v1026, %v1028
      %v1041 = vsel %vm1035, %v1028, %v1030
      %v1042 = vsel %vm1035, %v1030, %v1032
      %v1043 = vsel %vm1035, %v1032, %v1034
      %v1045 = vsel %vm310, %v1016, 0
      %v1048 = vsel %vm314, %v1036, 0
      %v1051 = vsel %vm314, %v1037, 0
      %v1054 = vsel %vm314, %v1038, 0
      %v1057 = vsel %vm314, %v1039, 0
      %v1060 = vsel %vm314, %v1040, 0
      %v1063 = vsel %vm314, %v1041, 0
      %v1066 = vsel %vm314, %v1042, 0
      %v1069 = vsel %vm314, %v1043, 0
      %v1072 = vsel %vm314, %v1034, 0
      %1074 = vmatpush.bf16.msra.mxu0 0
      %1075 = vmatpush.bf16.msra.mxu0 0
      %1076 = vmatpush.bf16.msra.mxu0 0
      %1077 = vmatpush.bf16.msra.mxu0 0
      %1078 = vmatpush.bf16.msra.mxu0 0
      %1079 = vmatpush.bf16.msra.mxu0 0
      %1080 = vmatpush.bf16.msra.mxu0 0
      %1081 = vmatpush.bf16.msra.mxu0 %v1048
      %1082 = vmatmul.bf16.gmra.mxu0 %v1045
      %v1083 = vpop.f32.mrf.mxu0
      %v1084 = vadd.f32 0.0, %v1083
      %v1085 = vpop.f32.mrf.mxu0
      %1086 = vdwg.mxu0
      %1087 = vmatpush.bf16.msra.mxu0 0
      %1088 = vmatpush.bf16.msra.mxu0 0
      %1089 = vmatpush.bf16.msra.mxu0 0
      %1090 = vmatpush.bf16.msra.mxu0 0
      %1091 = vmatpush.bf16.msra.mxu0 0
      %1092 = vmatpush.bf16.msra.mxu0 0
      %1093 = vmatpush.bf16.msra.mxu0 0
      %1094 = vmatpush.bf16.msra.mxu0 %v1051
      %1095 = vmatmul.bf16.gmra.mxu0 %v1045
      %v1096 = vpop.f32.mrf.mxu0
      %v1097 = vadd.f32 0.0, %v1096
      %v1098 = vpop.f32.mrf.mxu0
      %1099 = vdwg.mxu0
      %1100 = vmatpush.bf16.msra.mxu0 0
      %1101 = vmatpush.bf16.msra.mxu0 0
      %1102 = vmatpush.bf16.msra.mxu0 0
      %1103 = vmatpush.bf16.msra.mxu0 0
      %1104 = vmatpush.bf16.msra.mxu0 0
      %1105 = vmatpush.bf16.msra.mxu0 0
      %1106 = vmatpush.bf16.msra.mxu0 0
      %1107 = vmatpush.bf16.msra.mxu0 %v1054
      %1108 = vmatmul.bf16.gmra.mxu0 %v1045
      %v1109 = vpop.f32.mrf.mxu0
      %v1110 = vadd.f32 0.0, %v1109
      %v1111 = vpop.f32.mrf.mxu0
      %1112 = vdwg.mxu0
      %1113 = vmatpush.bf16.msra.mxu0 0
      %1114 = vmatpush.bf16.msra.mxu0 0
      %1115 = vmatpush.bf16.msra.mxu0 0
      %1116 = vmatpush.bf16.msra.mxu0 0
      %1117 = vmatpush.bf16.msra.mxu0 0
      %1118 = vmatpush.bf16.msra.mxu0 0
      %1119 = vmatpush.bf16.msra.mxu0 0
      %1120 = vmatpush.bf16.msra.mxu0 %v1057
      %1121 = vmatmul.bf16.gmra.mxu0 %v1045
      %v1122 = vpop.f32.mrf.mxu0
      %v1123 = vadd.f32 0.0, %v1122
      %v1124 = vpop.f32.mrf.mxu0
      %1125 = vdwg.mxu0
      %1126 = vmatpush.bf16.msra.mxu0 0
      %1127 = vmatpush.bf16.msra.mxu0 0
      %1128 = vmatpush.bf16.msra.mxu0 0
      %1129 = vmatpush.bf16.msra.mxu0 0
      %1130 = vmatpush.bf16.msra.mxu0 0
      %1131 = vmatpush.bf16.msra.mxu0 0
      %1132 = vmatpush.bf16.msra.mxu0 0
      %1133 = vmatpush.bf16.msra.mxu0 %v1060
      %1134 = vmatmul.bf16.gmra.mxu0 %v1045
      %v1135 = vpop.f32.mrf.mxu0
      %v1136 = vadd.f32 0.0, %v1135
      %v1137 = vpop.f32.mrf.mxu0
      %1138 = vdwg.mxu0
      %1139 = vmatpush.bf16.msra.mxu0 0
      %1140 = vmatpush.bf16.msra.mxu0 0
      %1141 = vmatpush.bf16.msra.mxu0 0
      %1142 = vmatpush.bf16.msra.mxu0 0
      %1143 = vmatpush.bf16.msra.mxu0 0
      %1144 = vmatpush.bf16.msra.mxu0 0
      %1145 = vmatpush.bf16.msra.mxu0 0
      %1146 = vmatpush.bf16.msra.mxu0 %v1063
      %1147 = vmatmul.bf16.gmra.mxu0 %v1045
      %v1148 = vpop.f32.mrf.mxu0
      %v1149 = vadd.f32 0.0, %v1148
      %v1150 = vpop.f32.mrf.mxu0
      %1151 = vdwg.mxu0
      %1152 = vmatpush.bf16.msra.mxu0 0
      %1153 = vmatpush.bf16.msra.mxu0 0
      %1154 = vmatpush.bf16.msra.mxu0 0
      %1155 = vmatpush.bf16.msra.mxu0 0
      %1156 = vmatpush.bf16.msra.mxu0 0
      %1157 = vmatpush.bf16.msra.mxu0 0
      %1158 = vmatpush.bf16.msra.mxu0 0
      %1159 = vmatpush.bf16.msra.mxu0 %v1066
      %1160 = vmatmul.bf16.gmra.mxu0 %v1045
      %v1161 = vpop.f32.mrf.mxu0
      %v1162 = vadd.f32 0.0, %v1161
      %v1163 = vpop.f32.mrf.mxu0
      %1164 = vdwg.mxu0
      %1165 = vmatpush.bf16.msra.mxu0 0
      %1166 = vmatpush.bf16.msra.mxu0 0
      %1167 = vmatpush.bf16.msra.mxu0 0
      %1168 = vmatpush.bf16.msra.mxu0 0
      %1169 = vmatpush.bf16.msra.mxu0 0
      %1170 = vmatpush.bf16.msra.mxu0 0
      %1171 = vmatpush.bf16.msra.mxu0 0
      %1172 = vmatpush.bf16.msra.mxu0 %v1069
      %1173 = vmatmul.bf16.gmra.mxu0 %v1045
      %v1174 = vpop.f32.mrf.mxu0
      %v1175 = vadd.f32 0.0, %v1174
      %v1176 = vpop.f32.mrf.mxu0
      %1177 = vdwg.mxu0
      %1178 = vmatpush.bf16.msra.mxu0 0
      %1179 = vmatpush.bf16.msra.mxu0 0
      %1180 = vmatpush.bf16.msra.mxu0 0
      %1181 = vmatpush.bf16.msra.mxu0 0
      %1182 = vmatpush.bf16.msra.mxu0 0
      %1183 = vmatpush.bf16.msra.mxu0 0
      %1184 = vmatpush.bf16.msra.mxu0 0
      %1185 = vmatpush.bf16.msra.mxu0 %v1072
      %1186 = vmatmul.bf16.gmra.mxu0 %v1045
      %v1187 = vpop.f32.mrf.mxu0
      %v1188 = vadd.f32 0.0, %v1187
      %v1189 = vpop.f32.mrf.mxu0
      %1190 = vdwg.mxu0
      %v1191 = vadd.f32 %v1006, %v1084
      %v1192 = vadd.f32 %v1007, %v1097
      %v1193 = vadd.f32 %v1008, %v1110
      %v1194 = vadd.f32 %v1009, %v1123
      %v1195 = vadd.f32 %v1010, %v1136
      %v1196 = vadd.f32 %v1011, %v1149
      %v1197 = vadd.f32 %v1012, %v1162
      %v1198 = vadd.f32 %v1013, %v1175
      %v1199 = vadd.f32 %v1014, %v1188
      %s1200 = scalar_lea.vmem %s2, 20
      %v1201 = vld [vmem:[%s1200] sm:$0xf]
      %1202 = vrot.lane.b32.xlu0 %v275, 92
      %v1203 = vpop.permute.xlu0 %1202
      %1204 = vrot.lane.b32.xlu0 %v277, 92
      %v1205 = vpop.permute.xlu0 %1204
      %1206 = vrot.lane.b32.xlu0 %v279, 92
      %v1207 = vpop.permute.xlu0 %1206
      %1208 = vrot.lane.b32.xlu0 %v281, 92
      %v1209 = vpop.permute.xlu0 %1208
      %1210 = vrot.lane.b32.xlu0 %v283, 92
      %v1211 = vpop.permute.xlu0 %1210
      %1212 = vrot.lane.b32.xlu0 %v285, 92
      %v1213 = vpop.permute.xlu0 %1212
      %1214 = vrot.lane.b32.xlu0 %v287, 92
      %v1215 = vpop.permute.xlu0 %1214
      %1216 = vrot.lane.b32.xlu0 %v289, 92
      %v1217 = vpop.permute.xlu0 %1216
      %1218 = vrot.lane.b32.xlu0 %v302, 92
      %v1219 = vpop.permute.xlu0 %1218
      %vm1220 = vcmask 752640
      %v1221 = vsel %vm1220, %v1203, %v1205
      %v1222 = vsel %vm1220, %v1205, %v1207
      %v1223 = vsel %vm1220, %v1207, %v1209
      %v1224 = vsel %vm1220, %v1209, %v1211
      %v1225 = vsel %vm1220, %v1211, %v1213
      %v1226 = vsel %vm1220, %v1213, %v1215
      %v1227 = vsel %vm1220, %v1215, %v1217
      %v1228 = vsel %vm1220, %v1217, %v1219
      %v1230 = vsel %vm310, %v1201, 0
      %v1233 = vsel %vm314, %v1221, 0
      %v1236 = vsel %vm314, %v1222, 0
      %v1239 = vsel %vm314, %v1223, 0
      %v1242 = vsel %vm314, %v1224, 0
      %v1245 = vsel %vm314, %v1225, 0
      %v1248 = vsel %vm314, %v1226, 0
      %v1251 = vsel %vm314, %v1227, 0
      %v1254 = vsel %vm314, %v1228, 0
      %v1257 = vsel %vm314, %v1219, 0
      %1259 = vmatpush.bf16.msra.mxu0 0
      %1260 = vmatpush.bf16.msra.mxu0 0
      %1261 = vmatpush.bf16.msra.mxu0 0
      %1262 = vmatpush.bf16.msra.mxu0 0
      %1263 = vmatpush.bf16.msra.mxu0 0
      %1264 = vmatpush.bf16.msra.mxu0 0
      %1265 = vmatpush.bf16.msra.mxu0 0
      %1266 = vmatpush.bf16.msra.mxu0 %v1233
      %1267 = vmatmul.bf16.gmra.mxu0 %v1230
      %v1268 = vpop.f32.mrf.mxu0
      %v1269 = vadd.f32 0.0, %v1268
      %v1270 = vpop.f32.mrf.mxu0
      %1271 = vdwg.mxu0
      %1272 = vmatpush.bf16.msra.mxu0 0
      %1273 = vmatpush.bf16.msra.mxu0 0
      %1274 = vmatpush.bf16.msra.mxu0 0
      %1275 = vmatpush.bf16.msra.mxu0 0
      %1276 = vmatpush.bf16.msra.mxu0 0
      %1277 = vmatpush.bf16.msra.mxu0 0
      %1278 = vmatpush.bf16.msra.mxu0 0
      %1279 = vmatpush.bf16.msra.mxu0 %v1236
      %1280 = vmatmul.bf16.gmra.mxu0 %v1230
      %v1281 = vpop.f32.mrf.mxu0
      %v1282 = vadd.f32 0.0, %v1281
      %v1283 = vpop.f32.mrf.mxu0
      %1284 = vdwg.mxu0
      %1285 = vmatpush.bf16.msra.mxu0 0
      %1286 = vmatpush.bf16.msra.mxu0 0
      %1287 = vmatpush.bf16.msra.mxu0 0
      %1288 = vmatpush.bf16.msra.mxu0 0
      %1289 = vmatpush.bf16.msra.mxu0 0
      %1290 = vmatpush.bf16.msra.mxu0 0
      %1291 = vmatpush.bf16.msra.mxu0 0
      %1292 = vmatpush.bf16.msra.mxu0 %v1239
      %1293 = vmatmul.bf16.gmra.mxu0 %v1230
      %v1294 = vpop.f32.mrf.mxu0
      %v1295 = vadd.f32 0.0, %v1294
      %v1296 = vpop.f32.mrf.mxu0
      %1297 = vdwg.mxu0
      %1298 = vmatpush.bf16.msra.mxu0 0
      %1299 = vmatpush.bf16.msra.mxu0 0
      %1300 = vmatpush.bf16.msra.mxu0 0
      %1301 = vmatpush.bf16.msra.mxu0 0
      %1302 = vmatpush.bf16.msra.mxu0 0
      %1303 = vmatpush.bf16.msra.mxu0 0
      %1304 = vmatpush.bf16.msra.mxu0 0
      %1305 = vmatpush.bf16.msra.mxu0 %v1242
      %1306 = vmatmul.bf16.gmra.mxu0 %v1230
      %v1307 = vpop.f32.mrf.mxu0
      %v1308 = vadd.f32 0.0, %v1307
      %v1309 = vpop.f32.mrf.mxu0
      %1310 = vdwg.mxu0
      %1311 = vmatpush.bf16.msra.mxu0 0
      %1312 = vmatpush.bf16.msra.mxu0 0
      %1313 = vmatpush.bf16.msra.mxu0 0
      %1314 = vmatpush.bf16.msra.mxu0 0
      %1315 = vmatpush.bf16.msra.mxu0 0
      %1316 = vmatpush.bf16.msra.mxu0 0
      %1317 = vmatpush.bf16.msra.mxu0 0
      %1318 = vmatpush.bf16.msra.mxu0 %v1245
      %1319 = vmatmul.bf16.gmra.mxu0 %v1230
      %v1320 = vpop.f32.mrf.mxu0
      %v1321 = vadd.f32 0.0, %v1320
      %v1322 = vpop.f32.mrf.mxu0
      %1323 = vdwg.mxu0
      %1324 = vmatpush.bf16.msra.mxu0 0
      %1325 = vmatpush.bf16.msra.mxu0 0
      %1326 = vmatpush.bf16.msra.mxu0 0
      %1327 = vmatpush.bf16.msra.mxu0 0
      %1328 = vmatpush.bf16.msra.mxu0 0
      %1329 = vmatpush.bf16.msra.mxu0 0
      %1330 = vmatpush.bf16.msra.mxu0 0
      %1331 = vmatpush.bf16.msra.mxu0 %v1248
      %1332 = vmatmul.bf16.gmra.mxu0 %v1230
      %v1333 = vpop.f32.mrf.mxu0
      %v1334 = vadd.f32 0.0, %v1333
      %v1335 = vpop.f32.mrf.mxu0
      %1336 = vdwg.mxu0
      %1337 = vmatpush.bf16.msra.mxu0 0
      %1338 = vmatpush.bf16.msra.mxu0 0
      %1339 = vmatpush.bf16.msra.mxu0 0
      %1340 = vmatpush.bf16.msra.mxu0 0
      %1341 = vmatpush.bf16.msra.mxu0 0
      %1342 = vmatpush.bf16.msra.mxu0 0
      %1343 = vmatpush.bf16.msra.mxu0 0
      %1344 = vmatpush.bf16.msra.mxu0 %v1251
      %1345 = vmatmul.bf16.gmra.mxu0 %v1230
      %v1346 = vpop.f32.mrf.mxu0
      %v1347 = vadd.f32 0.0, %v1346
      %v1348 = vpop.f32.mrf.mxu0
      %1349 = vdwg.mxu0
      %1350 = vmatpush.bf16.msra.mxu0 0
      %1351 = vmatpush.bf16.msra.mxu0 0
      %1352 = vmatpush.bf16.msra.mxu0 0
      %1353 = vmatpush.bf16.msra.mxu0 0
      %1354 = vmatpush.bf16.msra.mxu0 0
      %1355 = vmatpush.bf16.msra.mxu0 0
      %1356 = vmatpush.bf16.msra.mxu0 0
      %1357 = vmatpush.bf16.msra.mxu0 %v1254
      %1358 = vmatmul.bf16.gmra.mxu0 %v1230
      %v1359 = vpop.f32.mrf.mxu0
      %v1360 = vadd.f32 0.0, %v1359
      %v1361 = vpop.f32.mrf.mxu0
      %1362 = vdwg.mxu0
      %1363 = vmatpush.bf16.msra.mxu0 0
      %1364 = vmatpush.bf16.msra.mxu0 0
      %1365 = vmatpush.bf16.msra.mxu0 0
      %1366 = vmatpush.bf16.msra.mxu0 0
      %1367 = vmatpush.bf16.msra.mxu0 0
      %1368 = vmatpush.bf16.msra.mxu0 0
      %1369 = vmatpush.bf16.msra.mxu0 0
      %1370 = vmatpush.bf16.msra.mxu0 %v1257
      %1371 = vmatmul.bf16.gmra.mxu0 %v1230
      %v1372 = vpop.f32.mrf.mxu0
      %v1373 = vadd.f32 0.0, %v1372
      %v1374 = vpop.f32.mrf.mxu0
      %1375 = vdwg.mxu0
      %v1376 = vadd.f32 %v1191, %v1269
      %v1377 = vadd.f32 %v1192, %v1282
      %v1378 = vadd.f32 %v1193, %v1295
      %v1379 = vadd.f32 %v1194, %v1308
      %v1380 = vadd.f32 %v1195, %v1321
      %v1381 = vadd.f32 %v1196, %v1334
      %v1382 = vadd.f32 %v1197, %v1347
      %v1383 = vadd.f32 %v1198, %v1360
      %v1384 = vadd.f32 %v1199, %v1373
      %s1385 = scalar_lea.vmem %s2, 24
      %v1386 = vld [vmem:[%s1385] sm:$0xf]
      %1387 = vrot.lane.b32.xlu0 %v275, 60
      %v1388 = vpop.permute.xlu0 %1387
      %1389 = vrot.lane.b32.xlu0 %v277, 60
      %v1390 = vpop.permute.xlu0 %1389
      %1391 = vrot.lane.b32.xlu0 %v279, 60
      %v1392 = vpop.permute.xlu0 %1391
      %1393 = vrot.lane.b32.xlu0 %v281, 60
      %v1394 = vpop.permute.xlu0 %1393
      %1395 = vrot.lane.b32.xlu0 %v283, 60
      %v1396 = vpop.permute.xlu0 %1395
      %1397 = vrot.lane.b32.xlu0 %v285, 60
      %v1398 = vpop.permute.xlu0 %1397
      %1399 = vrot.lane.b32.xlu0 %v287, 60
      %v1400 = vpop.permute.xlu0 %1399
      %1401 = vrot.lane.b32.xlu0 %v289, 60
      %v1402 = vpop.permute.xlu0 %1401
      %1403 = vrot.lane.b32.xlu0 %v302, 60
      %v1404 = vpop.permute.xlu0 %1403
      %1405 = vrot.lane.b32.xlu0 %v299, 60
      %v1406 = vpop.permute.xlu0 %1405
      %vm1407 = vcmask 490496
      %v1408 = vsel %vm1407, %v1388, %v1390
      %v1409 = vsel %vm1407, %v1390, %v1392
      %v1410 = vsel %vm1407, %v1392, %v1394
      %v1411 = vsel %vm1407, %v1394, %v1396
      %v1412 = vsel %vm1407, %v1396, %v1398
      %v1413 = vsel %vm1407, %v1398, %v1400
      %v1414 = vsel %vm1407, %v1400, %v1402
      %v1415 = vsel %vm1407, %v1402, %v1404
      %v1416 = vsel %vm1407, %v1404, %v1406
      %v1418 = vsel %vm310, %v1386, 0
      %v1421 = vsel %vm314, %v1408, 0
      %v1424 = vsel %vm314, %v1409, 0
      %v1427 = vsel %vm314, %v1410, 0
      %v1430 = vsel %vm314, %v1411, 0
      %v1433 = vsel %vm314, %v1412, 0
      %v1436 = vsel %vm314, %v1413, 0
      %v1439 = vsel %vm314, %v1414, 0
      %v1442 = vsel %vm314, %v1415, 0
      %v1445 = vsel %vm314, %v1416, 0
      %1447 = vmatpush.bf16.msra.mxu0 0
      %1448 = vmatpush.bf16.msra.mxu0 0
      %1449 = vmatpush.bf16.msra.mxu0 0
      %1450 = vmatpush.bf16.msra.mxu0 0
      %1451 = vmatpush.bf16.msra.mxu0 0
      %1452 = vmatpush.bf16.msra.mxu0 0
      %1453 = vmatpush.bf16.msra.mxu0 0
      %1454 = vmatpush.bf16.msra.mxu0 %v1421
      %1455 = vmatmul.bf16.gmra.mxu0 %v1418
      %v1456 = vpop.f32.mrf.mxu0
      %v1457 = vadd.f32 0.0, %v1456
      %v1458 = vpop.f32.mrf.mxu0
      %1459 = vdwg.mxu0
      %1460 = vmatpush.bf16.msra.mxu0 0
      %1461 = vmatpush.bf16.msra.mxu0 0
      %1462 = vmatpush.bf16.msra.mxu0 0
      %1463 = vmatpush.bf16.msra.mxu0 0
      %1464 = vmatpush.bf16.msra.mxu0 0
      %1465 = vmatpush.bf16.msra.mxu0 0
      %1466 = vmatpush.bf16.msra.mxu0 0
      %1467 = vmatpush.bf16.msra.mxu0 %v1424
      %1468 = vmatmul.bf16.gmra.mxu0 %v1418
      %v1469 = vpop.f32.mrf.mxu0
      %v1470 = vadd.f32 0.0, %v1469
      %v1471 = vpop.f32.mrf.mxu0
      %1472 = vdwg.mxu0
      %1473 = vmatpush.bf16.msra.mxu0 0
      %1474 = vmatpush.bf16.msra.mxu0 0
      %1475 = vmatpush.bf16.msra.mxu0 0
      %1476 = vmatpush.bf16.msra.mxu0 0
      %1477 = vmatpush.bf16.msra.mxu0 0
      %1478 = vmatpush.bf16.msra.mxu0 0
      %1479 = vmatpush.bf16.msra.mxu0 0
      %1480 = vmatpush.bf16.msra.mxu0 %v1427
      %1481 = vmatmul.bf16.gmra.mxu0 %v1418
      %v1482 = vpop.f32.mrf.mxu0
      %v1483 = vadd.f32 0.0, %v1482
      %v1484 = vpop.f32.mrf.mxu0
      %1485 = vdwg.mxu0
      %1486 = vmatpush.bf16.msra.mxu0 0
      %1487 = vmatpush.bf16.msra.mxu0 0
      %1488 = vmatpush.bf16.msra.mxu0 0
      %1489 = vmatpush.bf16.msra.mxu0 0
      %1490 = vmatpush.bf16.msra.mxu0 0
      %1491 = vmatpush.bf16.msra.mxu0 0
      %1492 = vmatpush.bf16.msra.mxu0 0
      %1493 = vmatpush.bf16.msra.mxu0 %v1430
      %1494 = vmatmul.bf16.gmra.mxu0 %v1418
      %v1495 = vpop.f32.mrf.mxu0
      %v1496 = vadd.f32 0.0, %v1495
      %v1497 = vpop.f32.mrf.mxu0
      %1498 = vdwg.mxu0
      %1499 = vmatpush.bf16.msra.mxu0 0
      %1500 = vmatpush.bf16.msra.mxu0 0
      %1501 = vmatpush.bf16.msra.mxu0 0
      %1502 = vmatpush.bf16.msra.mxu0 0
      %1503 = vmatpush.bf16.msra.mxu0 0
      %1504 = vmatpush.bf16.msra.mxu0 0
      %1505 = vmatpush.bf16.msra.mxu0 0
      %1506 = vmatpush.bf16.msra.mxu0 %v1433
      %1507 = vmatmul.bf16.gmra.mxu0 %v1418
      %v1508 = vpop.f32.mrf.mxu0
      %v1509 = vadd.f32 0.0, %v1508
      %v1510 = vpop.f32.mrf.mxu0
      %1511 = vdwg.mxu0
      %1512 = vmatpush.bf16.msra.mxu0 0
      %1513 = vmatpush.bf16.msra.mxu0 0
      %1514 = vmatpush.bf16.msra.mxu0 0
      %1515 = vmatpush.bf16.msra.mxu0 0
      %1516 = vmatpush.bf16.msra.mxu0 0
      %1517 = vmatpush.bf16.msra.mxu0 0
      %1518 = vmatpush.bf16.msra.mxu0 0
      %1519 = vmatpush.bf16.msra.mxu0 %v1436
      %1520 = vmatmul.bf16.gmra.mxu0 %v1418
      %v1521 = vpop.f32.mrf.mxu0
      %v1522 = vadd.f32 0.0, %v1521
      %v1523 = vpop.f32.mrf.mxu0
      %1524 = vdwg.mxu0
      %1525 = vmatpush.bf16.msra.mxu0 0
      %1526 = vmatpush.bf16.msra.mxu0 0
      %1527 = vmatpush.bf16.msra.mxu0 0
      %1528 = vmatpush.bf16.msra.mxu0 0
      %1529 = vmatpush.bf16.msra.mxu0 0
      %1530 = vmatpush.bf16.msra.mxu0 0
      %1531 = vmatpush.bf16.msra.mxu0 0
      %1532 = vmatpush.bf16.msra.mxu0 %v1439
      %1533 = vmatmul.bf16.gmra.mxu0 %v1418
      %v1534 = vpop.f32.mrf.mxu0
      %v1535 = vadd.f32 0.0, %v1534
      %v1536 = vpop.f32.mrf.mxu0
      %1537 = vdwg.mxu0
      %1538 = vmatpush.bf16.msra.mxu0 0
      %1539 = vmatpush.bf16.msra.mxu0 0
      %1540 = vmatpush.bf16.msra.mxu0 0
      %1541 = vmatpush.bf16.msra.mxu0 0
      %1542 = vmatpush.bf16.msra.mxu0 0
      %1543 = vmatpush.bf16.msra.mxu0 0
      %1544 = vmatpush.bf16.msra.mxu0 0
      %1545 = vmatpush.bf16.msra.mxu0 %v1442
      %1546 = vmatmul.bf16.gmra.mxu0 %v1418
      %v1547 = vpop.f32.mrf.mxu0
      %v1548 = vadd.f32 0.0, %v1547
      %v1549 = vpop.f32.mrf.mxu0
      %1550 = vdwg.mxu0
      %1551 = vmatpush.bf16.msra.mxu0 0
      %1552 = vmatpush.bf16.msra.mxu0 0
      %1553 = vmatpush.bf16.msra.mxu0 0
      %1554 = vmatpush.bf16.msra.mxu0 0
      %1555 = vmatpush.bf16.msra.mxu0 0
      %1556 = vmatpush.bf16.msra.mxu0 0
      %1557 = vmatpush.bf16.msra.mxu0 0
      %1558 = vmatpush.bf16.msra.mxu0 %v1445
      %1559 = vmatmul.bf16.gmra.mxu0 %v1418
      %v1560 = vpop.f32.mrf.mxu0
      %v1561 = vadd.f32 0.0, %v1560
      %v1562 = vpop.f32.mrf.mxu0
      %1563 = vdwg.mxu0
      %v1564 = vadd.f32 %v1376, %v1457
      %v1565 = vadd.f32 %v1377, %v1470
      %v1566 = vadd.f32 %v1378, %v1483
      %v1567 = vadd.f32 %v1379, %v1496
      %v1568 = vadd.f32 %v1380, %v1509
      %v1569 = vadd.f32 %v1381, %v1522
      %v1570 = vadd.f32 %v1382, %v1535
      %v1571 = vadd.f32 %v1383, %v1548
      %v1572 = vadd.f32 %v1384, %v1561
      %s1573 = scalar_lea.vmem %s2, 28
      %v1574 = vld [vmem:[%s1573] sm:$0xf]
      %1575 = vrot.lane.b32.xlu0 %v275, 59
      %v1576 = vpop.permute.xlu0 %1575
      %1577 = vrot.lane.b32.xlu0 %v277, 59
      %v1578 = vpop.permute.xlu0 %1577
      %1579 = vrot.lane.b32.xlu0 %v279, 59
      %v1580 = vpop.permute.xlu0 %1579
      %1581 = vrot.lane.b32.xlu0 %v281, 59
      %v1582 = vpop.permute.xlu0 %1581
      %1583 = vrot.lane.b32.xlu0 %v283, 59
      %v1584 = vpop.permute.xlu0 %1583
      %1585 = vrot.lane.b32.xlu0 %v285, 59
      %v1586 = vpop.permute.xlu0 %1585
      %1587 = vrot.lane.b32.xlu0 %v287, 59
      %v1588 = vpop.permute.xlu0 %1587
      %1589 = vrot.lane.b32.xlu0 %v289, 59
      %v1590 = vpop.permute.xlu0 %1589
      %1591 = vrot.lane.b32.xlu0 %v302, 59
      %v1592 = vpop.permute.xlu0 %1591
      %1593 = vrot.lane.b32.xlu0 %v299, 59
      %v1594 = vpop.permute.xlu0 %1593
      %vm1595 = vcmask 482304
      %v1596 = vsel %vm1595, %v1576, %v1578
      %v1597 = vsel %vm1595, %v1578, %v1580
      %v1598 = vsel %vm1595, %v1580, %v1582
      %v1599 = vsel %vm1595, %v1582, %v1584
      %v1600 = vsel %vm1595, %v1584, %v1586
      %v1601 = vsel %vm1595, %v1586, %v1588
      %v1602 = vsel %vm1595, %v1588, %v1590
      %v1603 = vsel %vm1595, %v1590, %v1592
      %v1604 = vsel %vm1595, %v1592, %v1594
      %v1606 = vsel %vm310, %v1574, 0
      %v1609 = vsel %vm314, %v1596, 0
      %v1612 = vsel %vm314, %v1597, 0
      %v1615 = vsel %vm314, %v1598, 0
      %v1618 = vsel %vm314, %v1599, 0
      %v1621 = vsel %vm314, %v1600, 0
      %v1624 = vsel %vm314, %v1601, 0
      %v1627 = vsel %vm314, %v1602, 0
      %v1630 = vsel %vm314, %v1603, 0
      %v1633 = vsel %vm314, %v1604, 0
      %1635 = vmatpush.bf16.msra.mxu0 0
      %1636 = vmatpush.bf16.msra.mxu0 0
      %1637 = vmatpush.bf16.msra.mxu0 0
      %1638 = vmatpush.bf16.msra.mxu0 0
      %1639 = vmatpush.bf16.msra.mxu0 0
      %1640 = vmatpush.bf16.msra.mxu0 0
      %1641 = vmatpush.bf16.msra.mxu0 0
      %1642 = vmatpush.bf16.msra.mxu0 %v1609
      %1643 = vmatmul.bf16.gmra.mxu0 %v1606
      %v1644 = vpop.f32.mrf.mxu0
      %v1645 = vadd.f32 0.0, %v1644
      %v1646 = vpop.f32.mrf.mxu0
      %1647 = vdwg.mxu0
      %1648 = vmatpush.bf16.msra.mxu0 0
      %1649 = vmatpush.bf16.msra.mxu0 0
      %1650 = vmatpush.bf16.msra.mxu0 0
      %1651 = vmatpush.bf16.msra.mxu0 0
      %1652 = vmatpush.bf16.msra.mxu0 0
      %1653 = vmatpush.bf16.msra.mxu0 0
      %1654 = vmatpush.bf16.msra.mxu0 0
      %1655 = vmatpush.bf16.msra.mxu0 %v1612
      %1656 = vmatmul.bf16.gmra.mxu0 %v1606
      %v1657 = vpop.f32.mrf.mxu0
      %v1658 = vadd.f32 0.0, %v1657
      %v1659 = vpop.f32.mrf.mxu0
      %1660 = vdwg.mxu0
      %1661 = vmatpush.bf16.msra.mxu0 0
      %1662 = vmatpush.bf16.msra.mxu0 0
      %1663 = vmatpush.bf16.msra.mxu0 0
      %1664 = vmatpush.bf16.msra.mxu0 0
      %1665 = vmatpush.bf16.msra.mxu0 0
      %1666 = vmatpush.bf16.msra.mxu0 0
      %1667 = vmatpush.bf16.msra.mxu0 0
      %1668 = vmatpush.bf16.msra.mxu0 %v1615
      %1669 = vmatmul.bf16.gmra.mxu0 %v1606
      %v1670 = vpop.f32.mrf.mxu0
      %v1671 = vadd.f32 0.0, %v1670
      %v1672 = vpop.f32.mrf.mxu0
      %1673 = vdwg.mxu0
      %1674 = vmatpush.bf16.msra.mxu0 0
      %1675 = vmatpush.bf16.msra.mxu0 0
      %1676 = vmatpush.bf16.msra.mxu0 0
      %1677 = vmatpush.bf16.msra.mxu0 0
      %1678 = vmatpush.bf16.msra.mxu0 0
      %1679 = vmatpush.bf16.msra.mxu0 0
      %1680 = vmatpush.bf16.msra.mxu0 0
      %1681 = vmatpush.bf16.msra.mxu0 %v1618
      %1682 = vmatmul.bf16.gmra.mxu0 %v1606
      %v1683 = vpop.f32.mrf.mxu0
      %v1684 = vadd.f32 0.0, %v1683
      %v1685 = vpop.f32.mrf.mxu0
      %1686 = vdwg.mxu0
      %1687 = vmatpush.bf16.msra.mxu0 0
      %1688 = vmatpush.bf16.msra.mxu0 0
      %1689 = vmatpush.bf16.msra.mxu0 0
      %1690 = vmatpush.bf16.msra.mxu0 0
      %1691 = vmatpush.bf16.msra.mxu0 0
      %1692 = vmatpush.bf16.msra.mxu0 0
      %1693 = vmatpush.bf16.msra.mxu0 0
      %1694 = vmatpush.bf16.msra.mxu0 %v1621
      %1695 = vmatmul.bf16.gmra.mxu0 %v1606
      %v1696 = vpop.f32.mrf.mxu0
      %v1697 = vadd.f32 0.0, %v1696
      %v1698 = vpop.f32.mrf.mxu0
      %1699 = vdwg.mxu0
      %1700 = vmatpush.bf16.msra.mxu0 0
      %1701 = vmatpush.bf16.msra.mxu0 0
      %1702 = vmatpush.bf16.msra.mxu0 0
      %1703 = vmatpush.bf16.msra.mxu0 0
      %1704 = vmatpush.bf16.msra.mxu0 0
      %1705 = vmatpush.bf16.msra.mxu0 0
      %1706 = vmatpush.bf16.msra.mxu0 0
      %1707 = vmatpush.bf16.msra.mxu0 %v1624
      %1708 = vmatmul.bf16.gmra.mxu0 %v1606
      %v1709 = vpop.f32.mrf.mxu0
      %v1710 = vadd.f32 0.0, %v1709
      %v1711 = vpop.f32.mrf.mxu0
      %1712 = vdwg.mxu0
      %1713 = vmatpush.bf16.msra.mxu0 0
      %1714 = vmatpush.bf16.msra.mxu0 0
      %1715 = vmatpush.bf16.msra.mxu0 0
      %1716 = vmatpush.bf16.msra.mxu0 0
      %1717 = vmatpush.bf16.msra.mxu0 0
      %1718 = vmatpush.bf16.msra.mxu0 0
      %1719 = vmatpush.bf16.msra.mxu0 0
      %1720 = vmatpush.bf16.msra.mxu0 %v1627
      %1721 = vmatmul.bf16.gmra.mxu0 %v1606
      %v1722 = vpop.f32.mrf.mxu0
      %v1723 = vadd.f32 0.0, %v1722
      %v1724 = vpop.f32.mrf.mxu0
      %1725 = vdwg.mxu0
      %1726 = vmatpush.bf16.msra.mxu0 0
      %1727 = vmatpush.bf16.msra.mxu0 0
      %1728 = vmatpush.bf16.msra.mxu0 0
      %1729 = vmatpush.bf16.msra.mxu0 0
      %1730 = vmatpush.bf16.msra.mxu0 0
      %1731 = vmatpush.bf16.msra.mxu0 0
      %1732 = vmatpush.bf16.msra.mxu0 0
      %1733 = vmatpush.bf16.msra.mxu0 %v1630
      %1734 = vmatmul.bf16.gmra.mxu0 %v1606
      %v1735 = vpop.f32.mrf.mxu0
      %v1736 = vadd.f32 0.0, %v1735
      %v1737 = vpop.f32.mrf.mxu0
      %1738 = vdwg.mxu0
      %1739 = vmatpush.bf16.msra.mxu0 0
      %1740 = vmatpush.bf16.msra.mxu0 0
      %1741 = vmatpush.bf16.msra.mxu0 0
      %1742 = vmatpush.bf16.msra.mxu0 0
      %1743 = vmatpush.bf16.msra.mxu0 0
      %1744 = vmatpush.bf16.msra.mxu0 0
      %1745 = vmatpush.bf16.msra.mxu0 0
      %1746 = vmatpush.bf16.msra.mxu0 %v1633
      %1747 = vmatmul.bf16.gmra.mxu0 %v1606
      %v1748 = vpop.f32.mrf.mxu0
      %v1749 = vadd.f32 0.0, %v1748
      %v1750 = vpop.f32.mrf.mxu0
      %1751 = vdwg.mxu0
      %v1752 = vadd.f32 %v1564, %v1645
      %v1753 = vadd.f32 %v1565, %v1658
      %v1754 = vadd.f32 %v1566, %v1671
      %v1755 = vadd.f32 %v1567, %v1684
      %v1756 = vadd.f32 %v1568, %v1697
      %v1757 = vadd.f32 %v1569, %v1710
      %v1758 = vadd.f32 %v1570, %v1723
      %v1759 = vadd.f32 %v1571, %v1736
      %v1760 = vadd.f32 %v1572, %v1749
      %s1761 = scalar_lea.vmem %s2, 32
      %v1762 = vld [vmem:[%s1761] sm:$0xf]
      %1763 = vrot.lane.b32.xlu0 %v275, 58
      %v1764 = vpop.permute.xlu0 %1763
      %1765 = vrot.lane.b32.xlu0 %v277, 58
      %v1766 = vpop.permute.xlu0 %1765
      %1767 = vrot.lane.b32.xlu0 %v279, 58
      %v1768 = vpop.permute.xlu0 %1767
      %1769 = vrot.lane.b32.xlu0 %v281, 58
      %v1770 = vpop.permute.xlu0 %1769
      %1771 = vrot.lane.b32.xlu0 %v283, 58
      %v1772 = vpop.permute.xlu0 %1771
      %1773 = vrot.lane.b32.xlu0 %v285, 58
      %v1774 = vpop.permute.xlu0 %1773
      %1775 = vrot.lane.b32.xlu0 %v287, 58
      %v1776 = vpop.permute.xlu0 %1775
      %1777 = vrot.lane.b32.xlu0 %v289, 58
      %v1778 = vpop.permute.xlu0 %1777
      %1779 = vrot.lane.b32.xlu0 %v302, 58
      %v1780 = vpop.permute.xlu0 %1779
      %1781 = vrot.lane.b32.xlu0 %v299, 58
      %v1782 = vpop.permute.xlu0 %1781
      %vm1783 = vcmask 474112
      %v1784 = vsel %vm1783, %v1764, %v1766
      %v1785 = vsel %vm1783, %v1766, %v1768
      %v1786 = vsel %vm1783, %v1768, %v1770
      %v1787 = vsel %vm1783, %v1770, %v1772
      %v1788 = vsel %vm1783, %v1772, %v1774
      %v1789 = vsel %vm1783, %v1774, %v1776
      %v1790 = vsel %vm1783, %v1776, %v1778
      %v1791 = vsel %vm1783, %v1778, %v1780
      %v1792 = vsel %vm1783, %v1780, %v1782
      %v1794 = vsel %vm310, %v1762, 0
      %v1797 = vsel %vm314, %v1784, 0
      %v1800 = vsel %vm314, %v1785, 0
      %v1803 = vsel %vm314, %v1786, 0
      %v1806 = vsel %vm314, %v1787, 0
      %v1809 = vsel %vm314, %v1788, 0
      %v1812 = vsel %vm314, %v1789, 0
      %v1815 = vsel %vm314, %v1790, 0
      %v1818 = vsel %vm314, %v1791, 0
      %v1821 = vsel %vm314, %v1792, 0
      %1823 = vmatpush.bf16.msra.mxu0 0
      %1824 = vmatpush.bf16.msra.mxu0 0
      %1825 = vmatpush.bf16.msra.mxu0 0
      %1826 = vmatpush.bf16.msra.mxu0 0
      %1827 = vmatpush.bf16.msra.mxu0 0
      %1828 = vmatpush.bf16.msra.mxu0 0
      %1829 = vmatpush.bf16.msra.mxu0 0
      %1830 = vmatpush.bf16.msra.mxu0 %v1797
      %1831 = vmatmul.bf16.gmra.mxu0 %v1794
      %v1832 = vpop.f32.mrf.mxu0
      %v1833 = vadd.f32 0.0, %v1832
      %v1834 = vpop.f32.mrf.mxu0
      %1835 = vdwg.mxu0
      %1836 = vmatpush.bf16.msra.mxu0 0
      %1837 = vmatpush.bf16.msra.mxu0 0
      %1838 = vmatpush.bf16.msra.mxu0 0
      %1839 = vmatpush.bf16.msra.mxu0 0
      %1840 = vmatpush.bf16.msra.mxu0 0
      %1841 = vmatpush.bf16.msra.mxu0 0
      %1842 = vmatpush.bf16.msra.mxu0 0
      %1843 = vmatpush.bf16.msra.mxu0 %v1800
      %1844 = vmatmul.bf16.gmra.mxu0 %v1794
      %v1845 = vpop.f32.mrf.mxu0
      %v1846 = vadd.f32 0.0, %v1845
      %v1847 = vpop.f32.mrf.mxu0
      %1848 = vdwg.mxu0
      %1849 = vmatpush.bf16.msra.mxu0 0
      %1850 = vmatpush.bf16.msra.mxu0 0
      %1851 = vmatpush.bf16.msra.mxu0 0
      %1852 = vmatpush.bf16.msra.mxu0 0
      %1853 = vmatpush.bf16.msra.mxu0 0
      %1854 = vmatpush.bf16.msra.mxu0 0
      %1855 = vmatpush.bf16.msra.mxu0 0
      %1856 = vmatpush.bf16.msra.mxu0 %v1803
      %1857 = vmatmul.bf16.gmra.mxu0 %v1794
      %v1858 = vpop.f32.mrf.mxu0
      %v1859 = vadd.f32 0.0, %v1858
      %v1860 = vpop.f32.mrf.mxu0
      %1861 = vdwg.mxu0
      %1862 = vmatpush.bf16.msra.mxu0 0
      %1863 = vmatpush.bf16.msra.mxu0 0
      %1864 = vmatpush.bf16.msra.mxu0 0
      %1865 = vmatpush.bf16.msra.mxu0 0
      %1866 = vmatpush.bf16.msra.mxu0 0
      %1867 = vmatpush.bf16.msra.mxu0 0
      %1868 = vmatpush.bf16.msra.mxu0 0
      %1869 = vmatpush.bf16.msra.mxu0 %v1806
      %1870 = vmatmul.bf16.gmra.mxu0 %v1794
      %v1871 = vpop.f32.mrf.mxu0
      %v1872 = vadd.f32 0.0, %v1871
      %v1873 = vpop.f32.mrf.mxu0
      %1874 = vdwg.mxu0
      %1875 = vmatpush.bf16.msra.mxu0 0
      %1876 = vmatpush.bf16.msra.mxu0 0
      %1877 = vmatpush.bf16.msra.mxu0 0
      %1878 = vmatpush.bf16.msra.mxu0 0
      %1879 = vmatpush.bf16.msra.mxu0 0
      %1880 = vmatpush.bf16.msra.mxu0 0
      %1881 = vmatpush.bf16.msra.mxu0 0
      %1882 = vmatpush.bf16.msra.mxu0 %v1809
      %1883 = vmatmul.bf16.gmra.mxu0 %v1794
      %v1884 = vpop.f32.mrf.mxu0
      %v1885 = vadd.f32 0.0, %v1884
      %v1886 = vpop.f32.mrf.mxu0
      %1887 = vdwg.mxu0
      %1888 = vmatpush.bf16.msra.mxu0 0
      %1889 = vmatpush.bf16.msra.mxu0 0
      %1890 = vmatpush.bf16.msra.mxu0 0
      %1891 = vmatpush.bf16.msra.mxu0 0
      %1892 = vmatpush.bf16.msra.mxu0 0
      %1893 = vmatpush.bf16.msra.mxu0 0
      %1894 = vmatpush.bf16.msra.mxu0 0
      %1895 = vmatpush.bf16.msra.mxu0 %v1812
      %1896 = vmatmul.bf16.gmra.mxu0 %v1794
      %v1897 = vpop.f32.mrf.mxu0
      %v1898 = vadd.f32 0.0, %v1897
      %v1899 = vpop.f32.mrf.mxu0
      %1900 = vdwg.mxu0
      %1901 = vmatpush.bf16.msra.mxu0 0
      %1902 = vmatpush.bf16.msra.mxu0 0
      %1903 = vmatpush.bf16.msra.mxu0 0
      %1904 = vmatpush.bf16.msra.mxu0 0
      %1905 = vmatpush.bf16.msra.mxu0 0
      %1906 = vmatpush.bf16.msra.mxu0 0
      %1907 = vmatpush.bf16.msra.mxu0 0
      %1908 = vmatpush.bf16.msra.mxu0 %v1815
      %1909 = vmatmul.bf16.gmra.mxu0 %v1794
      %v1910 = vpop.f32.mrf.mxu0
      %v1911 = vadd.f32 0.0, %v1910
      %v1912 = vpop.f32.mrf.mxu0
      %1913 = vdwg.mxu0
      %1914 = vmatpush.bf16.msra.mxu0 0
      %1915 = vmatpush.bf16.msra.mxu0 0
      %1916 = vmatpush.bf16.msra.mxu0 0
      %1917 = vmatpush.bf16.msra.mxu0 0
      %1918 = vmatpush.bf16.msra.mxu0 0
      %1919 = vmatpush.bf16.msra.mxu0 0
      %1920 = vmatpush.bf16.msra.mxu0 0
      %1921 = vmatpush.bf16.msra.mxu0 %v1818
      %1922 = vmatmul.bf16.gmra.mxu0 %v1794
      %v1923 = vpop.f32.mrf.mxu0
      %v1924 = vadd.f32 0.0, %v1923
      %v1925 = vpop.f32.mrf.mxu0
      %1926 = vdwg.mxu0
      %1927 = vmatpush.bf16.msra.mxu0 0
      %1928 = vmatpush.bf16.msra.mxu0 0
      %1929 = vmatpush.bf16.msra.mxu0 0
      %1930 = vmatpush.bf16.msra.mxu0 0
      %1931 = vmatpush.bf16.msra.mxu0 0
      %1932 = vmatpush.bf16.msra.mxu0 0
      %1933 = vmatpush.bf16.msra.mxu0 0
      %1934 = vmatpush.bf16.msra.mxu0 %v1821
      %1935 = vmatmul.bf16.gmra.mxu0 %v1794
      %v1936 = vpop.f32.mrf.mxu0
      %v1937 = vadd.f32 0.0, %v1936
      %v1938 = vpop.f32.mrf.mxu0
      %1939 = vdwg.mxu0
      %v1940 = vadd.f32 %v1752, %v1833
      %v1941 = vadd.f32 %v1753, %v1846
      %v1942 = vadd.f32 %v1754, %v1859
      %v1943 = vadd.f32 %v1755, %v1872
      %v1944 = vadd.f32 %v1756, %v1885
      %v1945 = vadd.f32 %v1757, %v1898
      %v1946 = vadd.f32 %v1758, %v1911
      %v1947 = vadd.f32 %v1759, %v1924
      %v1948 = vadd.f32 %v1760, %v1937
      %v1949 = vmul.f32 %v1940, 0.2
      %v1950 = vmul.f32 %v1941, 0.2
      %v1951 = vmul.f32 %v1942, 0.2
      %v1952 = vmul.f32 %v1943, 0.2
      %v1953 = vmul.f32 %v1944, 0.2
      %v1954 = vmul.f32 %v1945, 0.2
      %v1955 = vmul.f32 %v1946, 0.2
      %v1956 = vmul.f32 %v1947, 0.2
      %v1957 = vmul.f32 %v1948, 0.2
      %v1958 = vmax.f32 %v1940, %v1949
      %v1959 = vmax.f32 %v1941, %v1950
      %v1960 = vmax.f32 %v1942, %v1951
      %v1961 = vmax.f32 %v1943, %v1952
      %v1962 = vmax.f32 %v1944, %v1953
      %v1963 = vmax.f32 %v1945, %v1954
      %v1964 = vmax.f32 %v1946, %v1955
      %v1965 = vmax.f32 %v1947, %v1956
      %v1966 = vmax.f32 %v1948, %v1957
      %vm1967 = vcmask 261120
      %1968 = vst.msk [vmem:[%s263] sm:$0xff] %vm1967, %v1958
      %1970 = vrot.lane.b32.xlu0 %v1958, 126
      %v1971 = vpop.permute.xlu0 %1970
      %vm1973 = vcmask 523520
      %1974 = vst.msk [vmem:[%s263] sm:$0xff] %vm1973, %v1971
      %1975 = vrot.lane.b32.xlu0 %v1958, 124
      %v1976 = vpop.permute.xlu0 %1975
      %vm1978 = vcmask 785920
      %1979 = vst.msk [vmem:[%s263] sm:$0xff] %vm1978, %v1976
      %1981 = vrot.lane.b32.xlu0 %v1958, 122
      %v1982 = vpop.permute.xlu0 %1981
      %1983 = vrot.lane.b32.xlu0 %v1959, 122
      %v1984 = vpop.permute.xlu0 %1983
      %vm1985 = vcmask 998400
      %v1986 = vsel %vm1985, %v1982, %v1984
      %vm1988 = vcmask 1048320
      %1989 = vst.msk [vmem:[%s263] sm:$0xff] %vm1988, %v1986
      %1990 = vrot.lane.b32.xlu0 %v1959, 120
      %v1991 = vpop.permute.xlu0 %1990
      %1993 = vst.msk [vmem:[%s263 + $0x8] sm:$0xff] %vm1967, %v1991
      %1994 = vrot.lane.b32.xlu0 %v1959, 118
      %v1995 = vpop.permute.xlu0 %1994
      %1997 = vst.msk [vmem:[%s263 + $0x8] sm:$0xff] %vm1973, %v1995
      %1998 = vrot.lane.b32.xlu0 %v1959, 116
      %v1999 = vpop.permute.xlu0 %1998
      %2001 = vst.msk [vmem:[%s263 + $0x8] sm:$0xff] %vm1978, %v1999
      %2003 = vrot.lane.b32.xlu0 %v1959, 114
      %v2004 = vpop.permute.xlu0 %2003
      %2005 = vrot.lane.b32.xlu0 %v1960, 114
      %v2006 = vpop.permute.xlu0 %2005
      %vm2007 = vcmask 932864
      %v2008 = vsel %vm2007, %v2004, %v2006
      %2010 = vst.msk [vmem:[%s263 + $0x8] sm:$0xff] %vm1988, %v2008
      %2011 = vrot.lane.b32.xlu0 %v1960, 112
      %v2012 = vpop.permute.xlu0 %2011
      %2014 = vst.msk [vmem:[%s263 + $0x10] sm:$0xff] %vm1967, %v2012
      %2015 = vrot.lane.b32.xlu0 %v1960, 110
      %v2016 = vpop.permute.xlu0 %2015
      %2018 = vst.msk [vmem:[%s263 + $0x10] sm:$0xff] %vm1973, %v2016
      %2019 = vrot.lane.b32.xlu0 %v1960, 108
      %v2020 = vpop.permute.xlu0 %2019
      %2022 = vst.msk [vmem:[%s263 + $0x10] sm:$0xff] %vm1978, %v2020
      %2024 = vrot.lane.b32.xlu0 %v1960, 106
      %v2025 = vpop.permute.xlu0 %2024
      %2026 = vrot.lane.b32.xlu0 %v1961, 106
      %v2027 = vpop.permute.xlu0 %2026
      %vm2028 = vcmask 867328
      %v2029 = vsel %vm2028, %v2025, %v2027
      %2031 = vst.msk [vmem:[%s263 + $0x10] sm:$0xff] %vm1988, %v2029
      %2032 = vrot.lane.b32.xlu0 %v1961, 104
      %v2033 = vpop.permute.xlu0 %2032
      %2035 = vst.msk [vmem:[%s263 + $0x18] sm:$0xff] %vm1967, %v2033
      %2036 = vrot.lane.b32.xlu0 %v1961, 102
      %v2037 = vpop.permute.xlu0 %2036
      %2039 = vst.msk [vmem:[%s263 + $0x18] sm:$0xff] %vm1973, %v2037
      %2040 = vrot.lane.b32.xlu0 %v1961, 100
      %v2041 = vpop.permute.xlu0 %2040
      %2043 = vst.msk [vmem:[%s263 + $0x18] sm:$0xff] %vm1978, %v2041
      %2045 = vrot.lane.b32.xlu0 %v1961, 98
      %v2046 = vpop.permute.xlu0 %2045
      %2047 = vrot.lane.b32.xlu0 %v1962, 98
      %v2048 = vpop.permute.xlu0 %2047
      %vm2049 = vcmask 801792
      %v2050 = vsel %vm2049, %v2046, %v2048
      %2052 = vst.msk [vmem:[%s263 + $0x18] sm:$0xff] %vm1988, %v2050
      %2053 = vrot.lane.b32.xlu0 %v1962, 96
      %v2054 = vpop.permute.xlu0 %2053
      %2056 = vst.msk [vmem:[%s263 + $0x20] sm:$0xff] %vm1967, %v2054
      %2057 = vrot.lane.b32.xlu0 %v1962, 94
      %v2058 = vpop.permute.xlu0 %2057
      %2060 = vst.msk [vmem:[%s263 + $0x20] sm:$0xff] %vm1973, %v2058
      %2062 = vrot.lane.b32.xlu0 %v1962, 92
      %v2063 = vpop.permute.xlu0 %2062
      %2064 = vrot.lane.b32.xlu0 %v1963, 92
      %v2065 = vpop.permute.xlu0 %2064
      %vm2066 = vcmask 752640
      %v2067 = vsel %vm2066, %v2063, %v2065
      %2069 = vst.msk [vmem:[%s263 + $0x20] sm:$0xff] %vm1978, %v2067
      %2070 = vrot.lane.b32.xlu0 %v1963, 90
      %v2071 = vpop.permute.xlu0 %2070
      %2073 = vst.msk [vmem:[%s263 + $0x20] sm:$0xff] %vm1988, %v2071
      %2074 = vrot.lane.b32.xlu0 %v1963, 88
      %v2075 = vpop.permute.xlu0 %2074
      %2077 = vst.msk [vmem:[%s263 + $0x28] sm:$0xff] %vm1967, %v2075
      %2078 = vrot.lane.b32.xlu0 %v1963, 86
      %v2079 = vpop.permute.xlu0 %2078
      %2081 = vst.msk [vmem:[%s263 + $0x28] sm:$0xff] %vm1973, %v2079
      %2083 = vrot.lane.b32.xlu0 %v1963, 84
      %v2084 = vpop.permute.xlu0 %2083
      %2085 = vrot.lane.b32.xlu0 %v1964, 84
      %v2086 = vpop.permute.xlu0 %2085
      %vm2087 = vcmask 687104
      %v2088 = vsel %vm2087, %v2084, %v2086
      %2090 = vst.msk [vmem:[%s263 + $0x28] sm:$0xff] %vm1978, %v2088
      %2091 = vrot.lane.b32.xlu0 %v1964, 82
      %v2092 = vpop.permute.xlu0 %2091
      %2094 = vst.msk [vmem:[%s263 + $0x28] sm:$0xff] %vm1988, %v2092
      %2095 = vrot.lane.b32.xlu0 %v1964, 80
      %v2096 = vpop.permute.xlu0 %2095
      %2098 = vst.msk [vmem:[%s263 + $0x30] sm:$0xff] %vm1967, %v2096
      %2099 = vrot.lane.b32.xlu0 %v1964, 78
      %v2100 = vpop.permute.xlu0 %2099
      %2102 = vst.msk [vmem:[%s263 + $0x30] sm:$0xff] %vm1973, %v2100
      %2104 = vrot.lane.b32.xlu0 %v1964, 76
      %v2105 = vpop.permute.xlu0 %2104
      %2106 = vrot.lane.b32.xlu0 %v1965, 76
      %v2107 = vpop.permute.xlu0 %2106
      %vm2108 = vcmask 621568
      %v2109 = vsel %vm2108, %v2105, %v2107
      %2111 = vst.msk [vmem:[%s263 + $0x30] sm:$0xff] %vm1978, %v2109
      %2112 = vrot.lane.b32.xlu0 %v1965, 74
      %v2113 = vpop.permute.xlu0 %2112
      %2115 = vst.msk [vmem:[%s263 + $0x30] sm:$0xff] %vm1988, %v2113
      %2116 = vrot.lane.b32.xlu0 %v1965, 72
      %v2117 = vpop.permute.xlu0 %2116
      %2119 = vst.msk [vmem:[%s263 + $0x38] sm:$0xff] %vm1967, %v2117
      %2120 = vrot.lane.b32.xlu0 %v1965, 70
      %v2121 = vpop.permute.xlu0 %2120
      %2123 = vst.msk [vmem:[%s263 + $0x38] sm:$0xff] %vm1973, %v2121
      %2125 = vrot.lane.b32.xlu0 %v1965, 68
      %v2126 = vpop.permute.xlu0 %2125
      %2127 = vrot.lane.b32.xlu0 %v1966, 68
      %v2128 = vpop.permute.xlu0 %2127
      %vm2129 = vcmask 556032
      %v2130 = vsel %vm2129, %v2126, %v2128
      %2132 = vst.msk [vmem:[%s263 + $0x38] sm:$0xff] %vm1978, %v2130
      %2133 = vrot.lane.b32.xlu0 %v1966, 66
      %v2134 = vpop.permute.xlu0 %2133
      %2136 = vst.msk [vmem:[%s263 + $0x38] sm:$0xff] %vm1988, %v2134
      %s2137 = smul.u32 8, %s20
      %p2138 = scmp.lt.s32.totalorder %s19, 1
      %s2139 = scalar_select %p2138, %s19, 1
      %p2140 = scmp.lt.s32.totalorder %s2137, 7
      %s2141 = scalar_select %p2140, %s2137, 7
      %s2142 = smul.addr %s2139, 8
      %s2143 = sadd.s32 %s2141, %s2142
      %s2144 = smul.addr %s2143, 8
      %s2145 = scalar_lea.vmem %s4, %s2144
      // Predicated region
      $region37: #{deconv_with_activation.1} parent=35 // pred_check
        %p2146 = pneg %p145
      $region38: #{deconv_with_activation.1} parent=35 // pred_check_branch
        %2148 = sbr.rel (%p2146) target = $region40
      $region39: #{deconv_with_activation.1} parent=35 // pred_region
        %s2149 = smul.u32 8, %s20
      $region40: #{deconv_with_activation.1} parent=35 // pred_fallthru
        _
    $region36: #{deconv_with_activation.1} parent=5 // pred_fallthru
      _
    %p2150 = scmp.le.s32.totalorder 2, %s10
    // Predicated region
    $region41: #{deconv_with_activation.1} parent=5 // pred_check
      %p2151 = pneg %p2150
    $region42: #{deconv_with_activation.1} parent=5 // pred_check_branch
      %2153 = sbr.rel (%p2151) target = $region44
    $region43: #{deconv_with_activation.1} parent=5 // pred_region
      %s2154 = ssub.s32 %s10, 2
      // Predicated region
      $region45: #{deconv_with_activation.1} parent=43 // pred_check
        %p2155 = pneg %p151
      $region46: #{deconv_with_activation.1} parent=43 // pred_check_branch
        %2157 = sbr.rel (%p2155) target = $region48
      $region47: #{deconv_with_activation.1} parent=43 // pred_region
        %s2158 = smul.u32 8, %s22
        %p2159 = scmp.lt.s32.totalorder %s21, 1
        %s2160 = scalar_select %p2159, %s21, 1
        %p2161 = scmp.lt.s32.totalorder %s2158, 7
        %s2162 = scalar_select %p2161, %s2158, 7
        %s2163 = smul.addr %s2160, 8
        %s2164 = sadd.s32 %s2162, %s2163
        %s2165 = smul.addr %s2164, 8
        %s2166 = scalar_lea.vmem %s4, %s2165
      $region48: #{deconv_with_activation.1} parent=43 // pred_fallthru
        _
    $region44: #{deconv_with_activation.1} parent=5 // pred_fallthru
      _
  $region6: #{deconv_with_activation.1} parent=0 // loop_footer
    %s14 = sadd.s32 1, %s10
  $region7: #{deconv_with_activation.1} parent=0 // loop_footer_branch
    %9 = sbr.rel target = $region3
  $region8: #{deconv_with_activation.1} parent=0 // loop_exit
    _

</llo_original>
